<compile_context>
chip_gen: v5e
topology: v5e:2x2
jax: 0.10.0
libtpu: 0.0.40
codegen_flags: <defaults>
</compile_context>

<pallas_src>
import functools

import jax
import jax.numpy as jnp
from jax import lax
from jax.experimental import pallas as pl
from jax.experimental.pallas import tpu as pltpu

ROW_TILE = 128                      # flattened-spatial rows per grid step
VMEM_LIMIT = 48 * 1024 * 1024       # explicit scoped-VMEM limit (fits v7x 64MiB)
COMPUTE_DTYPE = jnp.bfloat16        # MXU operand dtype (accumulation is f32)
_NEG = -3.0e38                      # -inf substitute for maxpool padding


# ----------------------------------------------------------------------------
# Fused Conv2d + (folded) BatchNorm + ReLU
# ----------------------------------------------------------------------------
def _conv_kernel(x_ref, w_ref, b_ref, o_ref, *, kh, kw, wp, mt, cdt):
    # x_ref: (1, nrows, Cin)  whole flattened zero-padded image (VMEM-resident)
    # w_ref: (kh*kw, Cin, Cout) BN-folded weights, one (Cin, Cout) matrix per tap
    # b_ref: (1, Cout)          BN-folded bias
    # o_ref: (1, mt, Cout)      rows [t*mt, (t+1)*mt) of the over-wide conv output
    t = pl.program_id(1)
    base = pl.multiple_of(t * mt, mt)
    cout = o_ref.shape[-1]
    xr = x_ref.at[0]                                    # (nrows, Cin) view
    acc = jnp.broadcast_to(b_ref[...].astype(jnp.float32), (mt, cout))
    for dy in range(kh):
        for dx in range(kw):
            off = dy * wp + dx
            slab = xr[pl.ds(base + off, mt), :].astype(cdt)      # (mt, Cin)
            w_tap = w_ref[dy * kw + dx].astype(cdt)              # (Cin, Cout)
            acc = acc + jnp.dot(slab, w_tap,
                                preferred_element_type=jnp.float32)
    o_ref[0] = jnp.maximum(acc, 0.0).astype(o_ref.dtype)


def _conv_s1_core(xp, w, b, *, compute_dtype=COMPUTE_DTYPE):
    """Valid (no extra padding) stride-1 conv + bias + ReLU.

    xp: (B, Hp, Wp, Cin) already spatially padded.  w: (kh, kw, Cin, Cout).
    Returns (B, Ho, Wo, Cout) float32.
    """
    B, Hp, Wp, Cin = xp.shape
    kh, kw, _, Cout = w.shape
    Ho, Wo = Hp - kh + 1, Wp - kw + 1
    M = Ho * Wp                       # "over-wide" rows (cols >= Wo are discarded)
    mt = ROW_TILE
    nt = (M + mt - 1) // mt
    nrows = nt * mt + (kh - 1) * Wp + (kw - 1)   # no in-kernel read can go OOB

    xf = xp.reshape(B, Hp * Wp, Cin)
    xf = jnp.pad(xf, ((0, 0), (0, nrows - Hp * Wp), (0, 0)))
    wt = w.reshape(kh * kw, Cin, Cout)
    bt = b.reshape(1, Cout)

    kernel = functools.partial(_conv_kernel, kh=kh, kw=kw, wp=Wp, mt=mt,
                               cdt=compute_dtype)
    out = pl.pallas_call(
        kernel,
        out_shape=jax.ShapeDtypeStruct((B, nt * mt, Cout), jnp.float32),
        grid=(B, nt),
        in_specs=[
            pl.BlockSpec((1, nrows, Cin), lambda bi, ti: (bi, 0, 0)),
            pl.BlockSpec((kh * kw, Cin, Cout), lambda bi, ti: (0, 0, 0)),
            pl.BlockSpec((1, Cout), lambda bi, ti: (0, 0)),
        ],
        out_specs=pl.BlockSpec((1, mt, Cout), lambda bi, ti: (bi, ti, 0)),
        compiler_params=pltpu.CompilerParams(
            dimension_semantics=("parallel", "parallel"),
            vmem_limit_bytes=VMEM_LIMIT),
    )(xf, wt, bt)
    return out[:, :M, :].reshape(B, Ho, Wp, Cout)[:, :, :Wo, :]


def conv_bn_relu(x, w, b, *, stride=1, padding=0, compute_dtype=COMPUTE_DTYPE):
    """x: (B, H, W, Cin) NHWC f32.  w: (kh, kw, Cin, Cout) BN-folded.  b: (Cout,)."""
    B, H, W, Cin = x.shape
    kh, kw, _, Cout = w.shape
    if padding:
        x = jnp.pad(x, ((0, 0), (padding, padding), (padding, padding), (0, 0)))
    if stride == 1:
        return _conv_s1_core(x, w, b, compute_dtype=compute_dtype)
    if stride != 2:
        raise NotImplementedError("GoogLeNet only uses strides 1 and 2")
    # stride 2: 2x2 space-to-depth turns it into a stride-1 ceil(k/2) conv.
    _, Hp, Wp, _ = x.shape
    assert Hp % 2 == 0 and Wp % 2 == 0
    xs = x.reshape(B, Hp // 2, 2, Wp // 2, 2, Cin)
    xs = xs.transpose(0, 1, 3, 2, 4, 5).reshape(B, Hp // 2, Wp // 2, 4 * Cin)
    ksh, ksw = (kh + 1) // 2, (kw + 1) // 2
    wpad = jnp.zeros((2 * ksh, 2 * ksw, Cin, Cout), w.dtype).at[:kh, :kw].set(w)
    ws = wpad.reshape(ksh, 2, ksw, 2, Cin, Cout)
    ws = ws.transpose(0, 2, 1, 3, 4, 5).reshape(ksh, ksw, 4 * Cin, Cout)
    return _conv_s1_core(xs, ws, b, compute_dtype=compute_dtype)


# ----------------------------------------------------------------------------
# MaxPool2d (kernel=3, padding=1, stride 1 or 2)
# ----------------------------------------------------------------------------
def _maxpool_kernel(x_ref, o_ref, *, k, wp, mt):
    t = pl.program_id(1)
    base = pl.multiple_of(t * mt, mt)
    xr = x_ref.at[0]
    acc = xr[pl.ds(base, mt), :]
    for dy in range(k):
        for dx in range(k):
            if dy == 0 and dx == 0:
                continue
            acc = jnp.maximum(acc, xr[pl.ds(base + dy * wp + dx, mt), :])
    o_ref[0] = acc


def maxpool2d(x, *, k=3, stride=2, padding=1):
    B, H, W, C = x.shape
    xp = jnp.pad(x, ((0, 0), (padding, padding), (padding, padding), (0, 0)),
                 constant_values=_NEG)
    Hp, Wp = H + 2 * padding, W + 2 * padding
    Hm, Wm = Hp - k + 1, Wp - k + 1
    M = Hm * Wp
    mt = ROW_TILE
    nt = (M + mt - 1) // mt
    nrows = nt * mt + (k - 1) * Wp + (k - 1)
    xf = xp.reshape(B, Hp * Wp, C)
    xf = jnp.pad(xf, ((0, 0), (0, nrows - Hp * Wp), (0, 0)),
                 constant_values=_NEG)
    kernel = functools.partial(_maxpool_kernel, k=k, wp=Wp, mt=mt)
    out = pl.pallas_call(
        kernel,
        out_shape=jax.ShapeDtypeStruct((B, nt * mt, C), x.dtype),
        grid=(B, nt),
        in_specs=[pl.BlockSpec((1, nrows, C), lambda bi, ti: (bi, 0, 0))],
        out_specs=pl.BlockSpec((1, mt, C), lambda bi, ti: (bi, ti, 0)),
        compiler_params=pltpu.CompilerParams(
            dimension_semantics=("parallel", "parallel"),
            vmem_limit_bytes=VMEM_LIMIT),
    )(xf)
    y = out[:, :M, :].reshape(B, Hm, Wp, C)[:, :, :Wm, :]
    if stride > 1:
        y = y[:, ::stride, ::stride, :]
    return y


# ----------------------------------------------------------------------------
# Head: AvgPool2d(7,1) + Dropout(eval = identity) + Linear, fused
# ----------------------------------------------------------------------------
def _head_kernel(x_ref, w_ref, b_ref, o_ref, *, cdt):
    x = x_ref[0].astype(jnp.float32)                       # (S, C)
    pooled = jnp.mean(x, axis=0, keepdims=True)            # (1, C)
    y = jnp.dot(pooled.astype(cdt), w_ref[...].astype(cdt),
                preferred_element_type=jnp.float32)
    o_ref[...] = (y + b_ref[...].astype(jnp.float32)).astype(o_ref.dtype)


def avgpool_fc(x, w_fc, b_fc, *, compute_dtype=COMPUTE_DTYPE):
    """x: (B, 7, 7, C).  w_fc: (C, num_classes).  b_fc: (num_classes,)."""
    B, H, W, C = x.shape
    NC = w_fc.shape[-1]
    xf = x.reshape(B, H * W, C)
    kernel = functools.partial(_head_kernel, cdt=compute_dtype)
    return pl.pallas_call(
        kernel,
        out_shape=jax.ShapeDtypeStruct((B, NC), jnp.float32),
        grid=(B,),
        in_specs=[
            pl.BlockSpec((1, H * W, C), lambda bi: (bi, 0, 0)),
            pl.BlockSpec((C, NC), lambda bi: (0, 0)),
            pl.BlockSpec((1, NC), lambda bi: (0, 0)),
        ],
        out_specs=pl.BlockSpec((1, NC), lambda bi: (bi, 0)),
        compiler_params=pltpu.CompilerParams(
            dimension_semantics=("parallel",),
            vmem_limit_bytes=VMEM_LIMIT),
    )(xf, w_fc, b_fc.reshape(1, NC))


# ----------------------------------------------------------------------------
# Parameters (conv_block = Conv2d + BatchNorm2d; BN folded for inference)
# ----------------------------------------------------------------------------
INCEPTION_CFG = (
    # name,  cin, out1x1, red3x3, out3x3, red5x5, out5x5, out_pool
    ('i3a', 192,  64,  96, 128, 16,  32,  32),
    ('i3b', 256, 128, 128, 192, 32,  96,  64),
    ('i4a', 480, 192,  96, 208, 16,  48,  64),
    ('i4b', 512, 160, 112, 224, 24,  64,  64),
    ('i4c', 512, 128, 128, 256, 24,  64,  64),
    ('i4d', 512, 112, 144, 288, 32,  64,  64),
    ('i4e', 528, 256, 160, 320, 32, 128, 128),
    ('i5a', 832, 256, 160, 320, 32, 128, 128),
    ('i5b', 832, 384, 192, 384, 48, 128, 128),
)


def _init_conv_bn(key, cin, cout, k):
    ks = jax.random.split(key, 6)
    fan_in = cin * k * k
    return {
        'w': jax.random.normal(ks[0], (k, k, cin, cout), jnp.float32)
             * (2.0 / fan_in) ** 0.5,
        'b': 0.05 * jax.random.normal(ks[1], (cout,), jnp.float32),
        'gamma': 0.8 + 0.4 * jax.random.uniform(ks[2], (cout,), jnp.float32),
        'beta': 0.05 * jax.random.normal(ks[3], (cout,), jnp.float32),
        'mean': 0.05 * jax.random.normal(ks[4], (cout,), jnp.float32),
        'var': 0.8 + 0.4 * jax.random.uniform(ks[5], (cout,), jnp.float32),
    }


def _fold_conv_bn(p, eps=1e-5):
    """Fold BatchNorm (inference) into the conv weight / bias."""
    scale = p['gamma'] / jnp.sqrt(p['var'] + eps)
    return p['w'] * scale[None, None, None, :], (p['b'] - p['mean']) * scale + p['beta']


def init_googlenet(key, num_classes=1000):
    keys = iter(jax.random.split(key, 64))
    params = {
        'conv1': _init_conv_bn(next(keys), 3, 64, 7),
        'conv2': _init_conv_bn(next(keys), 64, 192, 3),
    }
    for name, cin, o1, r3, o3, r5, o5, op in INCEPTION_CFG:
        params[name] = {
            'b1': _init_conv_bn(next(keys), cin, o1, 1),
            'b2r': _init_conv_bn(next(keys), cin, r3, 1),
            'b2': _init_conv_bn(next(keys), r3, o3, 3),
            'b3r': _init_conv_bn(next(keys), cin, r5, 1),
            'b3': _init_conv_bn(next(keys), r5, o5, 5),
            'b4': _init_conv_bn(next(keys), cin, op, 1),
        }
    params['fc_w'] = 0.02 * jax.random.normal(next(keys), (1024, num_classes),
                                              jnp.float32)
    params['fc_b'] = jnp.zeros((num_classes,), jnp.float32)
    return params


def fold_googlenet(params):
    fp = {'conv1': _fold_conv_bn(params['conv1']),
          'conv2': _fold_conv_bn(params['conv2']),
          'fc_w': params['fc_w'], 'fc_b': params['fc_b']}
    for name, *_ in INCEPTION_CFG:
        p = params[name]
        w1, b1 = _fold_conv_bn(p['b1'])
        w2r, b2r = _fold_conv_bn(p['b2r'])
        w3r, b3r = _fold_conv_bn(p['b3r'])
        w3, b3 = _fold_conv_bn(p['b2'])
        w5, b5 = _fold_conv_bn(p['b3'])
        wp_, bp_ = _fold_conv_bn(p['b4'])
        fp[name] = {
            # the three 1x1 convs reading the block input share one Pallas call
            'w_f1': jnp.concatenate([w1, w2r, w3r], axis=-1),
            'b_f1': jnp.concatenate([b1, b2r, b3r], axis=-1),
            'w3': w3, 'b3': b3, 'w5': w5, 'b5': b5, 'wp': wp_, 'bp': bp_,
        }
    return fp


# ----------------------------------------------------------------------------
# Forward pass (inference)
# ----------------------------------------------------------------------------
def inception_apply(x, p, o1, r3):
    y = conv_bn_relu(x, p['w_f1'], p['b_f1'])            # fused 1x1 convs
    b1 = y[..., :o1]
    b2 = conv_bn_relu(y[..., o1:o1 + r3], p['w3'], p['b3'], padding=1)
    b3 = conv_bn_relu(y[..., o1 + r3:], p['w5'], p['b5'], padding=2)
    b4 = conv_bn_relu(maxpool2d(x, k=3, stride=1, padding=1), p['wp'], p['bp'])
    return jnp.concatenate([b1, b2, b3, b4], axis=-1)


def googlenet_apply(x_nchw, fp):
    x = jnp.transpose(x_nchw, (0, 2, 3, 1))               # NCHW -> NHWC (once)
    w, b = fp['conv1']
    x = conv_bn_relu(x, w, b, stride=2, padding=3)
    x = maxpool2d(x)
    w, b = fp['conv2']
    x = conv_bn_relu(x, w, b, padding=1)
    x = maxpool2d(x)
    for (name, _cin, o1, r3, _o3, _r5, _o5, _op) in INCEPTION_CFG:
        if name in ('i4a', 'i5a'):
            x = maxpool2d(x)
        x = inception_apply(x, fp[name], o1, r3)
    return avgpool_fc(x, fp['fc_w'], fp['fc_b'])          # avgpool7 + fc1


# ----------------------------------------------------------------------------
# Pure-JAX references for per-kernel correctness checks
# ----------------------------------------------------------------------------
def _conv_ref(x, w, b, stride, padding):
    y = lax.conv_general_dilated(
        x, w, window_strides=(stride, stride),
        padding=((padding, padding), (padding, padding)),
        dimension_numbers=('NHWC', 'HWIO', 'NHWC'))
    return jnp.maximum(y + b[None, None, None, :], 0.0)


def _maxpool_ref(x, k, s, p):
    return lax.reduce_window(x, -jnp.inf, lax.max, (1, k, k, 1), (1, s, s, 1),
                             ((0, 0), (p, p), (p, p), (0, 0)))


def _check(name, got, want, tol):
    err = float(jnp.max(jnp.abs(got - want)) / (jnp.max(jnp.abs(want)) + 1e-6))
    assert got.shape == want.shape, f"{name}: shape {got.shape} vs {want.shape}"
    assert err < tol, f"{name}: relative error {err:.3e} >= {tol:.1e}"


if __name__ == "__main__":
    key = jax.random.PRNGKey(0)
    k_x, k_p, k_t = jax.random.split(key, 3)
    tks = jax.random.split(k_t, 20)

    # --- unit checks of every Pallas kernel against pure-JAX references ------
    x = jax.random.normal(tks[0], (2, 12, 20, 32), jnp.float32)
    w = 0.1 * jax.random.normal(tks[1], (3, 3, 32, 48), jnp.float32)
    b = 0.1 * jax.random.normal(tks[2], (48,), jnp.float32)
    _check('conv3x3_f32',
           conv_bn_relu(x, w, b, padding=1, compute_dtype=jnp.float32),
           _conv_ref(x, w, b, 1, 1), 1e-4)
    _check('conv3x3_bf16', conv_bn_relu(x, w, b, padding=1),
           _conv_ref(x, w, b, 1, 1), 5e-2)

    x = jax.random.normal(tks[3], (1, 9, 11, 8), jnp.float32)
    w = 0.1 * jax.random.normal(tks[4], (5, 5, 8, 16), jnp.float32)
    b = 0.1 * jax.random.normal(tks[5], (16,), jnp.float32)
    _check('conv5x5_f32',
           conv_bn_relu(x, w, b, padding=2, compute_dtype=jnp.float32),
           _conv_ref(x, w, b, 1, 2), 1e-4)

    x = jax.random.normal(tks[6], (2, 7, 7, 64), jnp.float32)
    w = 0.1 * jax.random.normal(tks[7], (1, 1, 64, 96), jnp.float32)
    b = 0.1 * jax.random.normal(tks[8], (96,), jnp.float32)
    _check('conv1x1_f32', conv_bn_relu(x, w, b, compute_dtype=jnp.float32),
           _conv_ref(x, w, b, 1, 0), 1e-4)

    x = jax.random.normal(tks[9], (1, 16, 20, 3), jnp.float32)
    w = 0.1 * jax.random.normal(tks[10], (7, 7, 3, 8), jnp.float32)
    b = 0.1 * jax.random.normal(tks[11], (8,), jnp.float32)
    _check('conv7x7_s2_f32',
           conv_bn_relu(x, w, b, stride=2, padding=3, compute_dtype=jnp.float32),
           _conv_ref(x, w, b, 2, 3), 1e-4)

    x = jax.random.normal(tks[12], (2, 13, 9, 16), jnp.float32)
    _check('maxpool_s2', maxpool2d(x, k=3, stride=2, padding=1),
           _maxpool_ref(x, 3, 2, 1), 1e-6)
    _check('maxpool_s1', maxpool2d(x, k=3, stride=1, padding=1),
           _maxpool_ref(x, 3, 1, 1), 1e-6)

    x = jax.random.normal(tks[13], (2, 7, 7, 64), jnp.float32)
    w = 0.1 * jax.random.normal(tks[14], (64, 16), jnp.float32)
    b = 0.1 * jax.random.normal(tks[15], (16,), jnp.float32)
    _check('head', avgpool_fc(x, w, b, compute_dtype=jnp.float32),
           jnp.mean(x, axis=(1, 2)) @ w + b[None, :], 1e-4)

    # BN folding algebra (pure JAX on both sides)
    cbp = _init_conv_bn(tks[16], 8, 12, 3)
    xb = jax.random.normal(tks[17], (2, 10, 10, 8), jnp.float32)
    yb = lax.conv_general_dilated(xb, cbp['w'], (1, 1), ((1, 1), (1, 1)),
                                  dimension_numbers=('NHWC', 'HWIO', 'NHWC'))
    yb = yb + cbp['b'][None, None, None, :]
    yb = cbp['gamma'] * (yb - cbp['mean']) / jnp.sqrt(cbp['var'] + 1e-5) + cbp['beta']
    wf, bf = _fold_conv_bn(cbp)
    _check('bn_fold', _conv_ref(xb, wf, bf, 1, 1), jnp.maximum(yb, 0.0), 1e-4)

    # --- full GoogLeNet forward (eval mode) ----------------------------------
    params = init_googlenet(k_p, num_classes=1000)
    fparams = fold_googlenet(params)
    x_in = jax.random.normal(k_x, (2, 3, 224, 224), jnp.float32)

    logits = jax.block_until_ready(jax.jit(googlenet_apply)(x_in, fparams))
    assert logits.shape == (2, 1000), logits.shape
    assert bool(jnp.all(jnp.isfinite(logits))), "non-finite logits"

    print("KERNEL_OK")
</pallas_src>

<mosaic_0001>
module attributes {stable_mosaic.version = 11 : i64} {
  func.func @_conv_kernel(%arg0: i32, %arg1: i32, %arg2: memref<1x430x32xf32, #tpu.memory_space<vmem>>, %arg3: memref<9x32x48xf32, #tpu.memory_space<vmem>>, %arg4: memref<1x48xf32, #tpu.memory_space<vmem>>, %arg5: memref<1x128x48xf32, #tpu.memory_space<vmem>>) attributes {dimension_semantics = [#tpu.dimension_semantics<parallel>, #tpu.dimension_semantics<parallel>], iteration_bounds = array<i64: 2, 3>, scalar_prefetch = 0 : i64, scratch_operands = 0 : i64, tpu.core_type = #tpu.core_type<tc>, window_params = [{transform_indices = @transform_0, window_bounds = array<i64: 1, 430, 32>}, {pipeline_mode = #tpu.pipeline_mode<synchronous>, transform_indices = @transform_1, window_bounds = array<i64: 9, 32, 48>}, {pipeline_mode = #tpu.pipeline_mode<synchronous>, transform_indices = @transform_2, window_bounds = array<i64: 1, 48>}, {transform_indices = @transform_3, window_bounds = array<i64: 1, 128, 48>}]} {
    %c128_i32 = arith.constant 128 : i32
    %0 = arith.muli %arg1, %c128_i32 : i32
    %1 = tpu.assume_multiple %0, 128 : i32
    %c0 = arith.constant 0 : index
    %c0_0 = arith.constant 0 : index
    %2 = vector.load %arg4[%c0, %c0_0] : memref<1x48xf32, #tpu.memory_space<vmem>>, vector<1x48xf32>
    %3 = vector.shape_cast %2 : vector<1x48xf32> to vector<1x48xf32>
    %4 = vector.broadcast %3 : vector<1x48xf32> to vector<128x48xf32>
    %c0_i32 = arith.constant 0 : i32
    %5 = arith.addi %1, %c0_i32 : i32
    %c0_i32_1 = arith.constant 0 : i32
    %c0_i32_2 = arith.constant 0 : i32
    %c0_i32_3 = arith.constant 0 : i32
    %6 = tpu.memref_slice %arg2[%c0_i32_1, %c0_i32_2, %c0_i32_3] : memref<1x430x32xf32, #tpu.memory_space<vmem>> -> memref<1x430x32xf32, #tpu.memory_space<vmem>>
    %7 = tpu.memref_squeeze %6 : memref<1x430x32xf32, #tpu.memory_space<vmem>> -> memref<430x32xf32, #tpu.memory_space<vmem>>
    %8 = arith.index_cast %5 : i32 to index
    %c0_4 = arith.constant 0 : index
    %9 = vector.load %7[%8, %c0_4] : memref<430x32xf32, #tpu.memory_space<vmem>>, vector<128x32xf32>
    %c0_5 = arith.constant 0 : index
    %c0_6 = arith.constant 0 : index
    %c0_7 = arith.constant 0 : index
    %10 = vector.load %arg3[%c0_5, %c0_6, %c0_7] : memref<9x32x48xf32, #tpu.memory_space<vmem>>, vector<1x32x48xf32>
    %11 = vector.shape_cast %10 : vector<1x32x48xf32> to vector<32x48xf32>
    %cst = arith.constant dense<0.000000e+00> : vector<128x48xf32>
    %12 = tpu.matmul %9, %11, %cst {dimension_numbers = #tpu.dot_dimension_numbers<[1], [0], [0], [1], [0, 0, 1, 1], [], []>} : vector<128x32xf32>, vector<32x48xf32>, vector<128x48xf32> -> vector<128x48xf32>
    %13 = arith.addf %4, %12 : vector<128x48xf32>
    %c1_i32 = arith.constant 1 : i32
    %14 = arith.addi %1, %c1_i32 : i32
    %c0_i32_8 = arith.constant 0 : i32
    %c0_i32_9 = arith.constant 0 : i32
    %c0_i32_10 = arith.constant 0 : i32
    %15 = tpu.memref_slice %arg2[%c0_i32_8, %c0_i32_9, %c0_i32_10] : memref<1x430x32xf32, #tpu.memory_space<vmem>> -> memref<1x430x32xf32, #tpu.memory_space<vmem>>
    %16 = tpu.memref_squeeze %15 : memref<1x430x32xf32, #tpu.memory_space<vmem>> -> memref<430x32xf32, #tpu.memory_space<vmem>>
    %17 = arith.index_cast %14 : i32 to index
    %c0_11 = arith.constant 0 : index
    %18 = vector.load %16[%17, %c0_11] : memref<430x32xf32, #tpu.memory_space<vmem>>, vector<128x32xf32>
    %c1 = arith.constant 1 : index
    %c0_12 = arith.constant 0 : index
    %c0_13 = arith.constant 0 : index
    %19 = vector.load %arg3[%c1, %c0_12, %c0_13] : memref<9x32x48xf32, #tpu.memory_space<vmem>>, vector<1x32x48xf32>
    %20 = vector.shape_cast %19 : vector<1x32x48xf32> to vector<32x48xf32>
    %cst_14 = arith.constant dense<0.000000e+00> : vector<128x48xf32>
    %21 = tpu.matmul %18, %20, %cst_14 {dimension_numbers = #tpu.dot_dimension_numbers<[1], [0], [0], [1], [0, 0, 1, 1], [], []>} : vector<128x32xf32>, vector<32x48xf32>, vector<128x48xf32> -> vector<128x48xf32>
    %22 = arith.addf %13, %21 : vector<128x48xf32>
    %c2_i32 = arith.constant 2 : i32
    %23 = arith.addi %1, %c2_i32 : i32
    %c0_i32_15 = arith.constant 0 : i32
    %c0_i32_16 = arith.constant 0 : i32
    %c0_i32_17 = arith.constant 0 : i32
    %24 = tpu.memref_slice %arg2[%c0_i32_15, %c0_i32_16, %c0_i32_17] : memref<1x430x32xf32, #tpu.memory_space<vmem>> -> memref<1x430x32xf32, #tpu.memory_space<vmem>>
    %25 = tpu.memref_squeeze %24 : memref<1x430x32xf32, #tpu.memory_space<vmem>> -> memref<430x32xf32, #tpu.memory_space<vmem>>
    %26 = arith.index_cast %23 : i32 to index
    %c0_18 = arith.constant 0 : index
    %27 = vector.load %25[%26, %c0_18] : memref<430x32xf32, #tpu.memory_space<vmem>>, vector<128x32xf32>
    %c2 = arith.constant 2 : index
    %c0_19 = arith.constant 0 : index
    %c0_20 = arith.constant 0 : index
    %28 = vector.load %arg3[%c2, %c0_19, %c0_20] : memref<9x32x48xf32, #tpu.memory_space<vmem>>, vector<1x32x48xf32>
    %29 = vector.shape_cast %28 : vector<1x32x48xf32> to vector<32x48xf32>
    %cst_21 = arith.constant dense<0.000000e+00> : vector<128x48xf32>
    %30 = tpu.matmul %27, %29, %cst_21 {dimension_numbers = #tpu.dot_dimension_numbers<[1], [0], [0], [1], [0, 0, 1, 1], [], []>} : vector<128x32xf32>, vector<32x48xf32>, vector<128x48xf32> -> vector<128x48xf32>
    %31 = arith.addf %22, %30 : vector<128x48xf32>
    %c22_i32 = arith.constant 22 : i32
    %32 = arith.addi %1, %c22_i32 : i32
    %c0_i32_22 = arith.constant 0 : i32
    %c0_i32_23 = arith.constant 0 : i32
    %c0_i32_24 = arith.constant 0 : i32
    %33 = tpu.memref_slice %arg2[%c0_i32_22, %c0_i32_23, %c0_i32_24] : memref<1x430x32xf32, #tpu.memory_space<vmem>> -> memref<1x430x32xf32, #tpu.memory_space<vmem>>
    %34 = tpu.memref_squeeze %33 : memref<1x430x32xf32, #tpu.memory_space<vmem>> -> memref<430x32xf32, #tpu.memory_space<vmem>>
    %35 = arith.index_cast %32 : i32 to index
    %c0_25 = arith.constant 0 : index
    %36 = vector.load %34[%35, %c0_25] : memref<430x32xf32, #tpu.memory_space<vmem>>, vector<128x32xf32>
    %c3 = arith.constant 3 : index
    %c0_26 = arith.constant 0 : index
    %c0_27 = arith.constant 0 : index
    %37 = vector.load %arg3[%c3, %c0_26, %c0_27] : memref<9x32x48xf32, #tpu.memory_space<vmem>>, vector<1x32x48xf32>
    %38 = vector.shape_cast %37 : vector<1x32x48xf32> to vector<32x48xf32>
    %cst_28 = arith.constant dense<0.000000e+00> : vector<128x48xf32>
    %39 = tpu.matmul %36, %38, %cst_28 {dimension_numbers = #tpu.dot_dimension_numbers<[1], [0], [0], [1], [0, 0, 1, 1], [], []>} : vector<128x32xf32>, vector<32x48xf32>, vector<128x48xf32> -> vector<128x48xf32>
    %40 = arith.addf %31, %39 : vector<128x48xf32>
    %c23_i32 = arith.constant 23 : i32
    %41 = arith.addi %1, %c23_i32 : i32
    %c0_i32_29 = arith.constant 0 : i32
    %c0_i32_30 = arith.constant 0 : i32
    %c0_i32_31 = arith.constant 0 : i32
    %42 = tpu.memref_slice %arg2[%c0_i32_29, %c0_i32_30, %c0_i32_31] : memref<1x430x32xf32, #tpu.memory_space<vmem>> -> memref<1x430x32xf32, #tpu.memory_space<vmem>>
    %43 = tpu.memref_squeeze %42 : memref<1x430x32xf32, #tpu.memory_space<vmem>> -> memref<430x32xf32, #tpu.memory_space<vmem>>
    %44 = arith.index_cast %41 : i32 to index
    %c0_32 = arith.constant 0 : index
    %45 = vector.load %43[%44, %c0_32] : memref<430x32xf32, #tpu.memory_space<vmem>>, vector<128x32xf32>
    %c4 = arith.constant 4 : index
    %c0_33 = arith.constant 0 : index
    %c0_34 = arith.constant 0 : index
    %46 = vector.load %arg3[%c4, %c0_33, %c0_34] : memref<9x32x48xf32, #tpu.memory_space<vmem>>, vector<1x32x48xf32>
    %47 = vector.shape_cast %46 : vector<1x32x48xf32> to vector<32x48xf32>
    %cst_35 = arith.constant dense<0.000000e+00> : vector<128x48xf32>
    %48 = tpu.matmul %45, %47, %cst_35 {dimension_numbers = #tpu.dot_dimension_numbers<[1], [0], [0], [1], [0, 0, 1, 1], [], []>} : vector<128x32xf32>, vector<32x48xf32>, vector<128x48xf32> -> vector<128x48xf32>
    %49 = arith.addf %40, %48 : vector<128x48xf32>
    %c24_i32 = arith.constant 24 : i32
    %50 = arith.addi %1, %c24_i32 : i32
    %c0_i32_36 = arith.constant 0 : i32
    %c0_i32_37 = arith.constant 0 : i32
    %c0_i32_38 = arith.constant 0 : i32
    %51 = tpu.memref_slice %arg2[%c0_i32_36, %c0_i32_37, %c0_i32_38] : memref<1x430x32xf32, #tpu.memory_space<vmem>> -> memref<1x430x32xf32, #tpu.memory_space<vmem>>
    %52 = tpu.memref_squeeze %51 : memref<1x430x32xf32, #tpu.memory_space<vmem>> -> memref<430x32xf32, #tpu.memory_space<vmem>>
    %53 = arith.index_cast %50 : i32 to index
    %c0_39 = arith.constant 0 : index
    %54 = vector.load %52[%53, %c0_39] : memref<430x32xf32, #tpu.memory_space<vmem>>, vector<128x32xf32>
    %c5 = arith.constant 5 : index
    %c0_40 = arith.constant 0 : index
    %c0_41 = arith.constant 0 : index
    %55 = vector.load %arg3[%c5, %c0_40, %c0_41] : memref<9x32x48xf32, #tpu.memory_space<vmem>>, vector<1x32x48xf32>
    %56 = vector.shape_cast %55 : vector<1x32x48xf32> to vector<32x48xf32>
    %cst_42 = arith.constant dense<0.000000e+00> : vector<128x48xf32>
    %57 = tpu.matmul %54, %56, %cst_42 {dimension_numbers = #tpu.dot_dimension_numbers<[1], [0], [0], [1], [0, 0, 1, 1], [], []>} : vector<128x32xf32>, vector<32x48xf32>, vector<128x48xf32> -> vector<128x48xf32>
    %58 = arith.addf %49, %57 : vector<128x48xf32>
    %c44_i32 = arith.constant 44 : i32
    %59 = arith.addi %1, %c44_i32 : i32
    %c0_i32_43 = arith.constant 0 : i32
    %c0_i32_44 = arith.constant 0 : i32
    %c0_i32_45 = arith.constant 0 : i32
    %60 = tpu.memref_slice %arg2[%c0_i32_43, %c0_i32_44, %c0_i32_45] : memref<1x430x32xf32, #tpu.memory_space<vmem>> -> memref<1x430x32xf32, #tpu.memory_space<vmem>>
    %61 = tpu.memref_squeeze %60 : memref<1x430x32xf32, #tpu.memory_space<vmem>> -> memref<430x32xf32, #tpu.memory_space<vmem>>
    %62 = arith.index_cast %59 : i32 to index
    %c0_46 = arith.constant 0 : index
    %63 = vector.load %61[%62, %c0_46] : memref<430x32xf32, #tpu.memory_space<vmem>>, vector<128x32xf32>
    %c6 = arith.constant 6 : index
    %c0_47 = arith.constant 0 : index
    %c0_48 = arith.constant 0 : index
    %64 = vector.load %arg3[%c6, %c0_47, %c0_48] : memref<9x32x48xf32, #tpu.memory_space<vmem>>, vector<1x32x48xf32>
    %65 = vector.shape_cast %64 : vector<1x32x48xf32> to vector<32x48xf32>
    %cst_49 = arith.constant dense<0.000000e+00> : vector<128x48xf32>
    %66 = tpu.matmul %63, %65, %cst_49 {dimension_numbers = #tpu.dot_dimension_numbers<[1], [0], [0], [1], [0, 0, 1, 1], [], []>} : vector<128x32xf32>, vector<32x48xf32>, vector<128x48xf32> -> vector<128x48xf32>
    %67 = arith.addf %58, %66 : vector<128x48xf32>
    %c45_i32 = arith.constant 45 : i32
    %68 = arith.addi %1, %c45_i32 : i32
    %c0_i32_50 = arith.constant 0 : i32
    %c0_i32_51 = arith.constant 0 : i32
    %c0_i32_52 = arith.constant 0 : i32
    %69 = tpu.memref_slice %arg2[%c0_i32_50, %c0_i32_51, %c0_i32_52] : memref<1x430x32xf32, #tpu.memory_space<vmem>> -> memref<1x430x32xf32, #tpu.memory_space<vmem>>
    %70 = tpu.memref_squeeze %69 : memref<1x430x32xf32, #tpu.memory_space<vmem>> -> memref<430x32xf32, #tpu.memory_space<vmem>>
    %71 = arith.index_cast %68 : i32 to index
    %c0_53 = arith.constant 0 : index
    %72 = vector.load %70[%71, %c0_53] : memref<430x32xf32, #tpu.memory_space<vmem>>, vector<128x32xf32>
    %c7 = arith.constant 7 : index
    %c0_54 = arith.constant 0 : index
    %c0_55 = arith.constant 0 : index
    %73 = vector.load %arg3[%c7, %c0_54, %c0_55] : memref<9x32x48xf32, #tpu.memory_space<vmem>>, vector<1x32x48xf32>
    %74 = vector.shape_cast %73 : vector<1x32x48xf32> to vector<32x48xf32>
    %cst_56 = arith.constant dense<0.000000e+00> : vector<128x48xf32>
    %75 = tpu.matmul %72, %74, %cst_56 {dimension_numbers = #tpu.dot_dimension_numbers<[1], [0], [0], [1], [0, 0, 1, 1], [], []>} : vector<128x32xf32>, vector<32x48xf32>, vector<128x48xf32> -> vector<128x48xf32>
    %76 = arith.addf %67, %75 : vector<128x48xf32>
    %c46_i32 = arith.constant 46 : i32
    %77 = arith.addi %1, %c46_i32 : i32
    %c0_i32_57 = arith.constant 0 : i32
    %c0_i32_58 = arith.constant 0 : i32
    %c0_i32_59 = arith.constant 0 : i32
    %78 = tpu.memref_slice %arg2[%c0_i32_57, %c0_i32_58, %c0_i32_59] : memref<1x430x32xf32, #tpu.memory_space<vmem>> -> memref<1x430x32xf32, #tpu.memory_space<vmem>>
    %79 = tpu.memref_squeeze %78 : memref<1x430x32xf32, #tpu.memory_space<vmem>> -> memref<430x32xf32, #tpu.memory_space<vmem>>
    %80 = arith.index_cast %77 : i32 to index
    %c0_60 = arith.constant 0 : index
    %81 = vector.load %79[%80, %c0_60] : memref<430x32xf32, #tpu.memory_space<vmem>>, vector<128x32xf32>
    %c8 = arith.constant 8 : index
    %c0_61 = arith.constant 0 : index
    %c0_62 = arith.constant 0 : index
    %82 = vector.load %arg3[%c8, %c0_61, %c0_62] : memref<9x32x48xf32, #tpu.memory_space<vmem>>, vector<1x32x48xf32>
    %83 = vector.shape_cast %82 : vector<1x32x48xf32> to vector<32x48xf32>
    %cst_63 = arith.constant dense<0.000000e+00> : vector<128x48xf32>
    %84 = tpu.matmul %81, %83, %cst_63 {dimension_numbers = #tpu.dot_dimension_numbers<[1], [0], [0], [1], [0, 0, 1, 1], [], []>} : vector<128x32xf32>, vector<32x48xf32>, vector<128x48xf32> -> vector<128x48xf32>
    %85 = arith.addf %76, %84 : vector<128x48xf32>
    %cst_64 = arith.constant 0.000000e+00 : f32
    %86 = vector.broadcast %cst_64 : f32 to vector<128x48xf32>
    %87 = arith.maximumf %85, %86 : vector<128x48xf32>
    %c0_65 = arith.constant 0 : index
    %c0_66 = arith.constant 0 : index
    %c0_67 = arith.constant 0 : index
    %88 = vector.load %arg5[%c0_65, %c0_66, %c0_67] : memref<1x128x48xf32, #tpu.memory_space<vmem>>, vector<1x128x48xf32>
    %89 = vector.shape_cast %88 : vector<1x128x48xf32> to vector<128x48xf32>
    %90 = vector.shape_cast %87 : vector<128x48xf32> to vector<1x128x48xf32>
    tpu.vector_store %arg5[%c0_65, %c0_66, %c0_67], %90 {strides = array<i32>} : memref<1x128x48xf32, #tpu.memory_space<vmem>>, vector<1x128x48xf32>,
    return
  }
  func.func @transform_0(%arg0: i32, %arg1: i32) -> (i32, i32, i32) {
    %c0_i32 = arith.constant 0 : i32
    %c0_i32_0 = arith.constant 0 : i32
    %c0_i32_1 = arith.constant 0 : i32
    return %arg0, %c0_i32, %c0_i32_0 : i32, i32, i32
  }
  func.func @transform_1(%arg0: i32, %arg1: i32) -> (i32, i32, i32) {
    %c0_i32 = arith.constant 0 : i32
    %c0_i32_0 = arith.constant 0 : i32
    %c0_i32_1 = arith.constant 0 : i32
    %c0_i32_2 = arith.constant 0 : i32
    return %c0_i32, %c0_i32_0, %c0_i32_1 : i32, i32, i32
  }
  func.func @transform_2(%arg0: i32, %arg1: i32) -> (i32, i32) {
    %c0_i32 = arith.constant 0 : i32
    %c0_i32_0 = arith.constant 0 : i32
    %c0_i32_1 = arith.constant 0 : i32
    return %c0_i32, %c0_i32_0 : i32, i32
  }
  func.func @transform_3(%arg0: i32, %arg1: i32) -> (i32, i32, i32) {
    %c0_i32 = arith.constant 0 : i32
    %c0_i32_0 = arith.constant 0 : i32
    return %arg0, %arg1, %c0_i32 : i32, i32, i32
  }
}

</mosaic_0001>

<llo_original>
// kernel: tpu_custom_call.1
$region0: #{tpu_custom_call.1}
  #allocation0 [shape = 'u32[]', space=smem, size = 0x4, offset = 0x4, fixed_abs, tag = 'smem constant byte address 0x4 - core index']
  #allocation1 [shape = 'u32[72,128]{1,0:T(1,128)}', space=vmem, size = 0x9000, scoped, tag = 'internal scratch']
  %s0 = inlined_call_operand.vmem [shape: f32[2,430,32], index: 0, kind: input, shape index: {}]
  %s1 = inlined_call_operand.vmem [shape: f32[9,32,48], index: 1, kind: input, shape index: {}]
  %s2 = inlined_call_operand.vmem [shape: f32[1,48], index: 2, kind: input, shape index: {}]
  %s3 = inlined_call_operand.vmem [shape: f32[2,384,48], index: 3, kind: output, shape index: {}]
  %s4 = sld [smem:[#allocation0]]
  $region45: #{tpu_custom_call.1} parent=0
    _
  %s6 = ssub.s32 1, %s4
  %s7 = scalar_select 0, %s6, %s4
  loop: start=0, step=1, limit=8
  $region2: #{tpu_custom_call.1} parent=0 // loop_pre_header
    _
  $region3: #{tpu_custom_call.1} parent=0 // loop_header
    %s9 = sphi 0, %s13
    %p10 = scmp.ge.s32.totalorder %s9, 8
    %s16 = sphi 0, %s28
    %s17 = sphi 0, %s24
    %s18 = sphi 0, %s16
    %s19 = sphi 0, %s17
    %s20 = sphi 0, %s18
    %s21 = sphi 0, %s19
    %s31 = sphi 0, %s33
    %s34 = sphi 0, %s31
    %s35 = sphi 0, %s34
    %s51 = sphi 0, %s35
    %s55 = sphi 0, %s55
    %s57 = sphi 0, %s55
    %s58 = sphi 0, %s57
    %s72 = sphi 0, %s58
    %s76 = sphi 0, %s76
    %s78 = sphi 0, %s76
    %s79 = sphi 0, %s78
    %s93 = sphi 0, %s79
    %s101 = sphi 0, %s103
    %s104 = sphi 0, %s101
    %s105 = sphi 0, %s104
    %s121 = sphi 0, %s105
  $region4: #{tpu_custom_call.1} parent=0 // loop_header_branch
    %12 = sbr.rel (%p10) target = $region8
  $region5: #{tpu_custom_call.1} parent=0 // loop_body
    %s14 = ssub.s32 %s9, 1
    %s15 = ssub.s32 %s9, 2
    %s22 = sadd.s32 1, %s17
    %p23 = scmp.ge.s32.totalorder %s22, 3
    %s24 = scalar_select %p23, 0, %s22
    %s25 = sadd.s32 1, %s16
    %s26 = scalar_select %p23, %s25, %s16
    %p27 = scmp.ge.s32.totalorder %s26, 2
    %s28 = scalar_select %p27, 0, %s26
    %s29 = ssub.s32 %s16, %s28
    %p30 = scmp.eq.s32.totalorder %s29, 0
    %s32 = sadd.s32 %s31, 1
    %s33 = scalar_select %p30, %s31, %s32
    %p36 = pneg %p30
    %p37 = scmp.eq.s32.totalorder %s9, 5
    %p38 = por %p36, %p37
    %p39 = scmp.ne.s32.totalorder %s31, %s34
    %p40 = scmp.eq.s32.totalorder %s9, 0
    %p41 = por %p39, %p40
    %p42 = scmp.ne.s32.totalorder %s31, %s34
    %p43 = scmp.eq.s32.totalorder %s14, 5
    %p44 = por %p42, %p43
    %p45 = scmp.ne.s32.totalorder %s34, %s35
    %p46 = scmp.eq.s32.totalorder %s14, 0
    %p47 = por %p45, %p46
    %p48 = scmp.ne.s32.totalorder %s34, %s35
    %p49 = scmp.eq.s32.totalorder %s15, 5
    %p50 = por %p48, %p49
    %p52 = scmp.ne.s32.totalorder %s35, %s51
    %p53 = scmp.eq.s32.totalorder %s15, 0
    %p54 = por %p52, %p53
    %s56 = sadd.s32 %s55, 1
    %p59 = scmp.eq.s32.totalorder %s9, 5
    %p60 = scmp.ne.s32.totalorder %s55, %s57
    %p61 = scmp.eq.s32.totalorder %s9, 0
    %p62 = por %p60, %p61
    %p63 = scmp.ne.s32.totalorder %s55, %s57
    %p64 = scmp.eq.s32.totalorder %s14, 5
    %p65 = por %p63, %p64
    %p66 = scmp.ne.s32.totalorder %s57, %s58
    %p67 = scmp.eq.s32.totalorder %s14, 0
    %p68 = por %p66, %p67
    %p69 = scmp.ne.s32.totalorder %s57, %s58
    %p70 = scmp.eq.s32.totalorder %s15, 5
    %p71 = por %p69, %p70
    %p73 = scmp.ne.s32.totalorder %s58, %s72
    %p74 = scmp.eq.s32.totalorder %s15, 0
    %p75 = por %p73, %p74
    %s77 = sadd.s32 %s76, 1
    %p80 = scmp.eq.s32.totalorder %s9, 5
    %p81 = scmp.ne.s32.totalorder %s76, %s78
    %p82 = scmp.eq.s32.totalorder %s9, 0
    %p83 = por %p81, %p82
    %p84 = scmp.ne.s32.totalorder %s76, %s78
    %p85 = scmp.eq.s32.totalorder %s14, 5
    %p86 = por %p84, %p85
    %p87 = scmp.ne.s32.totalorder %s78, %s79
    %p88 = scmp.eq.s32.totalorder %s14, 0
    %p89 = por %p87, %p88
    %p90 = scmp.ne.s32.totalorder %s78, %s79
    %p91 = scmp.eq.s32.totalorder %s15, 5
    %p92 = por %p90, %p91
    %p94 = scmp.ne.s32.totalorder %s79, %s93
    %p95 = scmp.eq.s32.totalorder %s15, 0
    %p96 = por %p94, %p95
    %s97 = ssub.s32 %s16, %s28
    %s98 = ssub.s32 %s17, %s24
    %s99 = sor.u32 %s97, %s98
    %p100 = scmp.eq.s32.totalorder %s99, 0
    %s102 = sadd.s32 %s101, 1
    %s103 = scalar_select %p100, %s101, %s102
    %p106 = pneg %p100
    %p107 = scmp.eq.s32.totalorder %s9, 5
    %p108 = por %p106, %p107
    %p109 = scmp.ne.s32.totalorder %s101, %s104
    %p110 = scmp.eq.s32.totalorder %s9, 0
    %p111 = por %p109, %p110
    %p112 = scmp.ne.s32.totalorder %s101, %s104
    %p113 = scmp.eq.s32.totalorder %s14, 5
    %p114 = por %p112, %p113
    %p115 = scmp.ne.s32.totalorder %s104, %s105
    %p116 = scmp.eq.s32.totalorder %s14, 0
    %p117 = por %p115, %p116
    %p118 = scmp.ne.s32.totalorder %s104, %s105
    %p119 = scmp.eq.s32.totalorder %s15, 5
    %p120 = por %p118, %p119
    %p122 = scmp.ne.s32.totalorder %s105, %s121
    %p123 = scmp.eq.s32.totalorder %s15, 0
    %p124 = por %p122, %p123
    %p125 = scmp.le.s32.totalorder 1, %s9
    %p126 = scmp.lt.s32.totalorder %s9, 7
    %p127 = pnand %p125, %p126
    %p128 = pneg %p127
    // Predicated region
    $region9: #{tpu_custom_call.1} parent=5 // pred_check
      _
    $region10: #{tpu_custom_call.1} parent=5 // pred_check_branch
      %130 = sbr.rel (%p127) target = $region12
    $region11: #{tpu_custom_call.1} parent=5 // pred_region
      %s131 = ssub.s32 %s9, 1
      // Predicated region
      $region13: #{tpu_custom_call.1} parent=11 // pred_check
        %p132 = pneg %p68
      $region14: #{tpu_custom_call.1} parent=11 // pred_check_branch
        %134 = sbr.rel (%p132) target = $region16
      $region15: #{tpu_custom_call.1} parent=11 // pred_region
        _
      $region16: #{tpu_custom_call.1} parent=11 // pred_fallthru
        _
      // Predicated region
      $region17: #{tpu_custom_call.1} parent=11 // pred_check
        %p135 = pneg %p89
      $region18: #{tpu_custom_call.1} parent=11 // pred_check_branch
        %137 = sbr.rel (%p135) target = $region20
      $region19: #{tpu_custom_call.1} parent=11 // pred_region
        _
      $region20: #{tpu_custom_call.1} parent=11 // pred_fallthru
        _
    $region12: #{tpu_custom_call.1} parent=5 // pred_fallthru
      _
    %p138 = scmp.lt.s32.totalorder %s9, 6
    // Predicated region
    $region21: #{tpu_custom_call.1} parent=5 // pred_check
      %p139 = pneg %p138
    $region22: #{tpu_custom_call.1} parent=5 // pred_check_branch
      %141 = sbr.rel (%p139) target = $region24
    $region23: #{tpu_custom_call.1} parent=5 // pred_region
      // Predicated region
      $region25: #{tpu_custom_call.1} parent=23 // pred_check
        %p142 = pneg %p41
      $region26: #{tpu_custom_call.1} parent=23 // pred_check_branch
        %144 = sbr.rel (%p142) target = $region28
      $region27: #{tpu_custom_call.1} parent=23 // pred_region
        %p145 = scmp.lt.s32.totalorder %s16, 1
        %s146 = scalar_select %p145, %s16, 1
        %s147 = smul.addr %s146, 54
        %s148 = smul.addr %s147, 8
        %s149 = scalar_lea.vmem %s0, %s148
      $region28: #{tpu_custom_call.1} parent=23 // pred_fallthru
        _
    $region24: #{tpu_custom_call.1} parent=5 // pred_fallthru
      _
    %p150 = scmp.le.s32.totalorder 1, %s9
    %p151 = scmp.lt.s32.totalorder %s9, 7
    %p152 = pnand %p150, %p151
    %p153 = pneg %p152
    // Predicated region
    $region29: #{tpu_custom_call.1} parent=5 // pred_check
      _
    $region30: #{tpu_custom_call.1} parent=5 // pred_check_branch
      %155 = sbr.rel (%p152) target = $region32
    $region31: #{tpu_custom_call.1} parent=5 // pred_region
      %s156 = ssub.s32 %s9, 1
      %p157 = scmp.lt.s32.totalorder %s18, 1
      %s158 = scalar_select %p157, %s18, 1
      %s159 = smul.addr %s158, 54
      %s160 = smul.addr %s159, 8
      %s161 = scalar_lea.vmem %s0, %s160
      %p162 = pneg %p47
      %p163 = pneg %p44
      %p164 = pneg %p68
      %p165 = pneg %p65
      %p166 = pneg %p89
      %p167 = pneg %p86
      %p168 = pneg %p117
      %p169 = pneg %p114
      %s170 = smul.u32 16, %s19
      %p171 = scmp.lt.s32.totalorder %s18, 1
      %s172 = scalar_select %p171, %s18, 1
      %p173 = scmp.lt.s32.totalorder %s170, 47
      %s174 = scalar_select %p173, %s170, 47
      %s175 = smul.addr %s172, 48
      %s176 = sadd.s32 %s174, %s175
      %s177 = smul.addr %s176, 8
      %s178 = scalar_lea.vmem %s3, %s177
      %p179 = scmp.lt.s32.totalorder %s18, 1
      %s180 = scalar_select %p179, %s18, 1
      %s181 = smul.addr %s180, 54
      %s182 = smul.addr %s181, 8
      %s183 = scalar_lea.vmem %s0, %s182
      %s184 = smul.u32 16, %s19
      %p185 = scmp.lt.s32.totalorder %s18, 1
      %s186 = scalar_select %p185, %s18, 1
      %p187 = scmp.lt.s32.totalorder %s184, 47
      %s188 = scalar_select %p187, %s184, 47
      %s189 = smul.addr %s186, 48
      %s190 = sadd.s32 %s188, %s189
      %s191 = smul.addr %s190, 8
      %s192 = scalar_lea.vmem %s3, %s191
      %s193 = smul.u32 16, %s19
      %s194 = smul.u32 %s19, 128
      %v195 = vld [vmem:[%s2] sm:$0x1]
      %v197 = vperm.slane %v195, 0
      %s199 = scalar_lea.vmem %s183, %s194
      %v200 = vld [vmem:[%s199] sm:$0xff]
      %v201 = vld [vmem:[%s199 + $0x8] sm:$0xff]
      %v202 = vld [vmem:[%s199 + $0x10] sm:$0xff]
      %v203 = vld [vmem:[%s199 + $0x18] sm:$0xff]
      %v204 = vld [vmem:[%s199 + $0x20] sm:$0xff]
      %v205 = vld [vmem:[%s199 + $0x28] sm:$0xff]
      %v206 = vld [vmem:[%s199 + $0x30] sm:$0xff]
      %v207 = vld [vmem:[%s199 + $0x38] sm:$0xff]
      %v208 = vld [vmem:[%s199 + $0x40] sm:$0xff]
      %v209 = vld [vmem:[%s199 + $0x48] sm:$0xff]
      %v210 = vld [vmem:[%s199 + $0x50] sm:$0xff]
      %v211 = vld [vmem:[%s199 + $0x58] sm:$0xff]
      %v212 = vld [vmem:[%s199 + $0x60] sm:$0xff]
      %v213 = vld [vmem:[%s199 + $0x68] sm:$0xff]
      %v214 = vld [vmem:[%s199 + $0x70] sm:$0xff]
      %v215 = vld [vmem:[%s199 + $0x78] sm:$0xff]
      %v216 = vld [vmem:[%s1] sm:$0xff]
      %v217 = vld [vmem:[%s1 + $0x8] sm:$0xff]
      %v218 = vld [vmem:[%s1 + $0x10] sm:$0xff]
      %v219 = vld [vmem:[%s1 + $0x18] sm:$0xff]
      %vm220 = vcmask 261120
      %v222 = vsel %vm220, %v200, 0
      %v225 = vsel %vm220, %v201, 0
      %v228 = vsel %vm220, %v202, 0
      %v231 = vsel %vm220, %v203, 0
      %v234 = vsel %vm220, %v204, 0
      %v237 = vsel %vm220, %v205, 0
      %v240 = vsel %vm220, %v206, 0
      %v243 = vsel %vm220, %v207, 0
      %v246 = vsel %vm220, %v208, 0
      %v249 = vsel %vm220, %v209, 0
      %v252 = vsel %vm220, %v210, 0
      %v255 = vsel %vm220, %v211, 0
      %v258 = vsel %vm220, %v212, 0
      %v261 = vsel %vm220, %v213, 0
      %v264 = vsel %vm220, %v214, 0
      %v267 = vsel %vm220, %v215, 0
      %269 = vmatpush.msra.mxu0 0.0
      %270 = vmatpush.msra.mxu0 0.0
      %271 = vmatpush.msra.mxu0 0.0
      %272 = vmatpush.msra.mxu0 0.0
      %273 = vmatpush.msra.mxu0 0.0
      %274 = vmatpush.msra.mxu0 0.0
      %275 = vmatpush.msra.mxu0 0.0
      %276 = vmatpush.msra.mxu0 0.0
      %277 = vmatpush.msra.mxu0 0.0
      %278 = vmatpush.msra.mxu0 0.0
      %279 = vmatpush.msra.mxu0 0.0
      %280 = vmatpush.msra.mxu0 0.0
      %281 = vmatpush.msra.mxu0 %v219
      %282 = vmatpush.msra.mxu0 %v218
      %283 = vmatpush.msra.mxu0 %v217
      %284 = vmatpush.msra.mxu0 %v216
      %285 = vmatmul.f32.gmra.mxu0 %v222
      %v286 = vpop.f32.mrf.mxu0
      %v287 = vadd.f32 0.0, %v286
      %288 = vmatmul.f32.gmra.mxu0 %v225
      %v289 = vpop.f32.mrf.mxu0
      %v290 = vadd.f32 0.0, %v289
      %291 = vmatmul.f32.gmra.mxu0 %v228
      %v292 = vpop.f32.mrf.mxu0
      %v293 = vadd.f32 0.0, %v292
      %294 = vmatmul.f32.gmra.mxu0 %v231
      %v295 = vpop.f32.mrf.mxu0
      %v296 = vadd.f32 0.0, %v295
      %297 = vmatmul.f32.gmra.mxu0 %v234
      %v298 = vpop.f32.mrf.mxu0
      %v299 = vadd.f32 0.0, %v298
      %300 = vmatmul.f32.gmra.mxu0 %v237
      %v301 = vpop.f32.mrf.mxu0
      %v302 = vadd.f32 0.0, %v301
      %303 = vmatmul.f32.gmra.mxu0 %v240
      %v304 = vpop.f32.mrf.mxu0
      %v305 = vadd.f32 0.0, %v304
      %306 = vmatmul.f32.gmra.mxu0 %v243
      %v307 = vpop.f32.mrf.mxu0
      %v308 = vadd.f32 0.0, %v307
      %309 = vmatmul.f32.gmra.mxu0 %v246
      %v310 = vpop.f32.mrf.mxu0
      %v311 = vadd.f32 0.0, %v310
      %312 = vmatmul.f32.gmra.mxu0 %v249
      %v313 = vpop.f32.mrf.mxu0
      %v314 = vadd.f32 0.0, %v313
      %315 = vmatmul.f32.gmra.mxu0 %v252
      %v316 = vpop.f32.mrf.mxu0
      %v317 = vadd.f32 0.0, %v316
      %318 = vmatmul.f32.gmra.mxu0 %v255
      %v319 = vpop.f32.mrf.mxu0
      %v320 = vadd.f32 0.0, %v319
      %321 = vmatmul.f32.gmra.mxu0 %v258
      %v322 = vpop.f32.mrf.mxu0
      %v323 = vadd.f32 0.0, %v322
      %324 = vmatmul.f32.gmra.mxu0 %v261
      %v325 = vpop.f32.mrf.mxu0
      %v326 = vadd.f32 0.0, %v325
      %327 = vmatmul.f32.gmra.mxu0 %v264
      %v328 = vpop.f32.mrf.mxu0
      %v329 = vadd.f32 0.0, %v328
      %330 = vmatmul.f32.gmra.mxu0 %v267
      %v331 = vpop.f32.mrf.mxu0
      %v332 = vadd.f32 0.0, %v331
      %333 = vdwg.mxu0
      %v334 = vadd.f32 %v197, %v287
      %v335 = vadd.f32 %v197, %v290
      %v336 = vadd.f32 %v197, %v293
      %v337 = vadd.f32 %v197, %v296
      %v338 = vadd.f32 %v197, %v299
      %v339 = vadd.f32 %v197, %v302
      %v340 = vadd.f32 %v197, %v305
      %v341 = vadd.f32 %v197, %v308
      %v342 = vadd.f32 %v197, %v311
      %v343 = vadd.f32 %v197, %v314
      %v344 = vadd.f32 %v197, %v317
      %v345 = vadd.f32 %v197, %v320
      %v346 = vadd.f32 %v197, %v323
      %v347 = vadd.f32 %v197, %v326
      %v348 = vadd.f32 %v197, %v329
      %v349 = vadd.f32 %v197, %v332
      %s350 = sadd.s32 %s194, 1
      %s351 = scalar_lea.vmem %s183, %s350
      %v352 = vld [vmem:[%s351] sm:$0xff]
      %v353 = vld [vmem:[%s351 + $0x8] sm:$0xff]
      %v354 = vld [vmem:[%s351 + $0x10] sm:$0xff]
      %v355 = vld [vmem:[%s351 + $0x18] sm:$0xff]
      %v356 = vld [vmem:[%s351 + $0x20] sm:$0xff]
      %v357 = vld [vmem:[%s351 + $0x28] sm:$0xff]
      %v358 = vld [vmem:[%s351 + $0x30] sm:$0xff]
      %v359 = vld [vmem:[%s351 + $0x38] sm:$0xff]
      %v360 = vld [vmem:[%s351 + $0x40] sm:$0xff]
      %v361 = vld [vmem:[%s351 + $0x48] sm:$0xff]
      %v362 = vld [vmem:[%s351 + $0x50] sm:$0xff]
      %v363 = vld [vmem:[%s351 + $0x58] sm:$0xff]
      %v364 = vld [vmem:[%s351 + $0x60] sm:$0xff]
      %v365 = vld [vmem:[%s351 + $0x68] sm:$0xff]
      %v366 = vld [vmem:[%s351 + $0x70] sm:$0xff]
      %v367 = vld [vmem:[%s351 + $0x78] sm:$0xff]
      %s368 = scalar_lea.vmem %s1, 32
      %v369 = vld [vmem:[%s368] sm:$0xff]
      %v370 = vld [vmem:[%s368 + $0x8] sm:$0xff]
      %v371 = vld [vmem:[%s368 + $0x10] sm:$0xff]
      %v372 = vld [vmem:[%s368 + $0x18] sm:$0xff]
      %v374 = vsel %vm220, %v352, 0
      %v377 = vsel %vm220, %v353, 0
      %v380 = vsel %vm220, %v354, 0
      %v383 = vsel %vm220, %v355, 0
      %v386 = vsel %vm220, %v356, 0
      %v389 = vsel %vm220, %v357, 0
      %v392 = vsel %vm220, %v358, 0
      %v395 = vsel %vm220, %v359, 0
      %v398 = vsel %vm220, %v360, 0
      %v401 = vsel %vm220, %v361, 0
      %v404 = vsel %vm220, %v362, 0
      %v407 = vsel %vm220, %v363, 0
      %v410 = vsel %vm220, %v364, 0
      %v413 = vsel %vm220, %v365, 0
      %v416 = vsel %vm220, %v366, 0
      %v419 = vsel %vm220, %v367, 0
      %421 = vmatpush.msra.mxu0 0.0
      %422 = vmatpush.msra.mxu0 0.0
      %423 = vmatpush.msra.mxu0 0.0
      %424 = vmatpush.msra.mxu0 0.0
      %425 = vmatpush.msra.mxu0 0.0
      %426 = vmatpush.msra.mxu0 0.0
      %427 = vmatpush.msra.mxu0 0.0
      %428 = vmatpush.msra.mxu0 0.0
      %429 = vmatpush.msra.mxu0 0.0
      %430 = vmatpush.msra.mxu0 0.0
      %431 = vmatpush.msra.mxu0 0.0
      %432 = vmatpush.msra.mxu0 0.0
      %433 = vmatpush.msra.mxu0 %v372
      %434 = vmatpush.msra.mxu0 %v371
      %435 = vmatpush.msra.mxu0 %v370
      %436 = vmatpush.msra.mxu0 %v369
      %437 = vmatmul.f32.gmra.mxu0 %v374
      %v438 = vpop.f32.mrf.mxu0
      %v439 = vadd.f32 0.0, %v438
      %440 = vmatmul.f32.gmra.mxu0 %v377
      %v441 = vpop.f32.mrf.mxu0
      %v442 = vadd.f32 0.0, %v441
      %443 = vmatmul.f32.gmra.mxu0 %v380
      %v444 = vpop.f32.mrf.mxu0
      %v445 = vadd.f32 0.0, %v444
      %446 = vmatmul.f32.gmra.mxu0 %v383
      %v447 = vpop.f32.mrf.mxu0
      %v448 = vadd.f32 0.0, %v447
      %449 = vmatmul.f32.gmra.mxu0 %v386
      %v450 = vpop.f32.mrf.mxu0
      %v451 = vadd.f32 0.0, %v450
      %452 = vmatmul.f32.gmra.mxu0 %v389
      %v453 = vpop.f32.mrf.mxu0
      %v454 = vadd.f32 0.0, %v453
      %455 = vmatmul.f32.gmra.mxu0 %v392
      %v456 = vpop.f32.mrf.mxu0
      %v457 = vadd.f32 0.0, %v456
      %458 = vmatmul.f32.gmra.mxu0 %v395
      %v459 = vpop.f32.mrf.mxu0
      %v460 = vadd.f32 0.0, %v459
      %461 = vmatmul.f32.gmra.mxu0 %v398
      %v462 = vpop.f32.mrf.mxu0
      %v463 = vadd.f32 0.0, %v462
      %464 = vmatmul.f32.gmra.mxu0 %v401
      %v465 = vpop.f32.mrf.mxu0
      %v466 = vadd.f32 0.0, %v465
      %467 = vmatmul.f32.gmra.mxu0 %v404
      %v468 = vpop.f32.mrf.mxu0
      %v469 = vadd.f32 0.0, %v468
      %470 = vmatmul.f32.gmra.mxu0 %v407
      %v471 = vpop.f32.mrf.mxu0
      %v472 = vadd.f32 0.0, %v471
      %473 = vmatmul.f32.gmra.mxu0 %v410
      %v474 = vpop.f32.mrf.mxu0
      %v475 = vadd.f32 0.0, %v474
      %476 = vmatmul.f32.gmra.mxu0 %v413
      %v477 = vpop.f32.mrf.mxu0
      %v478 = vadd.f32 0.0, %v477
      %479 = vmatmul.f32.gmra.mxu0 %v416
      %v480 = vpop.f32.mrf.mxu0
      %v481 = vadd.f32 0.0, %v480
      %482 = vmatmul.f32.gmra.mxu0 %v419
      %v483 = vpop.f32.mrf.mxu0
      %v484 = vadd.f32 0.0, %v483
      %485 = vdwg.mxu0
      %v486 = vadd.f32 %v334, %v439
      %v487 = vadd.f32 %v335, %v442
      %v488 = vadd.f32 %v336, %v445
      %v489 = vadd.f32 %v337, %v448
      %v490 = vadd.f32 %v338, %v451
      %v491 = vadd.f32 %v339, %v454
      %v492 = vadd.f32 %v340, %v457
      %v493 = vadd.f32 %v341, %v460
      %v494 = vadd.f32 %v342, %v463
      %v495 = vadd.f32 %v343, %v466
      %v496 = vadd.f32 %v344, %v469
      %v497 = vadd.f32 %v345, %v472
      %v498 = vadd.f32 %v346, %v475
      %v499 = vadd.f32 %v347, %v478
      %v500 = vadd.f32 %v348, %v481
      %v501 = vadd.f32 %v349, %v484
      %s502 = sadd.s32 %s194, 2
      %s503 = scalar_lea.vmem %s183, %s502
      %v504 = vld [vmem:[%s503] sm:$0xff]
      %v505 = vld [vmem:[%s503 + $0x8] sm:$0xff]
      %v506 = vld [vmem:[%s503 + $0x10] sm:$0xff]
      %v507 = vld [vmem:[%s503 + $0x18] sm:$0xff]
      %v508 = vld [vmem:[%s503 + $0x20] sm:$0xff]
      %v509 = vld [vmem:[%s503 + $0x28] sm:$0xff]
      %v510 = vld [vmem:[%s503 + $0x30] sm:$0xff]
      %v511 = vld [vmem:[%s503 + $0x38] sm:$0xff]
      %v512 = vld [vmem:[%s503 + $0x40] sm:$0xff]
      %v513 = vld [vmem:[%s503 + $0x48] sm:$0xff]
      %v514 = vld [vmem:[%s503 + $0x50] sm:$0xff]
      %v515 = vld [vmem:[%s503 + $0x58] sm:$0xff]
      %v516 = vld [vmem:[%s503 + $0x60] sm:$0xff]
      %v517 = vld [vmem:[%s503 + $0x68] sm:$0xff]
      %v518 = vld [vmem:[%s503 + $0x70] sm:$0xff]
      %v519 = vld [vmem:[%s503 + $0x78] sm:$0xff]
      %s520 = scalar_lea.vmem %s1, 64
      %v521 = vld [vmem:[%s520] sm:$0xff]
      %v522 = vld [vmem:[%s520 + $0x8] sm:$0xff]
      %v523 = vld [vmem:[%s520 + $0x10] sm:$0xff]
      %v524 = vld [vmem:[%s520 + $0x18] sm:$0xff]
      %v526 = vsel %vm220, %v504, 0
      %v529 = vsel %vm220, %v505, 0
      %v532 = vsel %vm220, %v506, 0
      %v535 = vsel %vm220, %v507, 0
      %v538 = vsel %vm220, %v508, 0
      %v541 = vsel %vm220, %v509, 0
      %v544 = vsel %vm220, %v510, 0
      %v547 = vsel %vm220, %v511, 0
      %v550 = vsel %vm220, %v512, 0
      %v553 = vsel %vm220, %v513, 0
      %v556 = vsel %vm220, %v514, 0
      %v559 = vsel %vm220, %v515, 0
      %v562 = vsel %vm220, %v516, 0
      %v565 = vsel %vm220, %v517, 0
      %v568 = vsel %vm220, %v518, 0
      %v571 = vsel %vm220, %v519, 0
      %573 = vmatpush.msra.mxu0 0.0
      %574 = vmatpush.msra.mxu0 0.0
      %575 = vmatpush.msra.mxu0 0.0
      %576 = vmatpush.msra.mxu0 0.0
      %577 = vmatpush.msra.mxu0 0.0
      %578 = vmatpush.msra.mxu0 0.0
      %579 = vmatpush.msra.mxu0 0.0
      %580 = vmatpush.msra.mxu0 0.0
      %581 = vmatpush.msra.mxu0 0.0
      %582 = vmatpush.msra.mxu0 0.0
      %583 = vmatpush.msra.mxu0 0.0
      %584 = vmatpush.msra.mxu0 0.0
      %585 = vmatpush.msra.mxu0 %v524
      %586 = vmatpush.msra.mxu0 %v523
      %587 = vmatpush.msra.mxu0 %v522
      %588 = vmatpush.msra.mxu0 %v521
      %589 = vmatmul.f32.gmra.mxu0 %v526
      %v590 = vpop.f32.mrf.mxu0
      %v591 = vadd.f32 0.0, %v590
      %592 = vmatmul.f32.gmra.mxu0 %v529
      %v593 = vpop.f32.mrf.mxu0
      %v594 = vadd.f32 0.0, %v593
      %595 = vmatmul.f32.gmra.mxu0 %v532
      %v596 = vpop.f32.mrf.mxu0
      %v597 = vadd.f32 0.0, %v596
      %598 = vmatmul.f32.gmra.mxu0 %v535
      %v599 = vpop.f32.mrf.mxu0
      %v600 = vadd.f32 0.0, %v599
      %601 = vmatmul.f32.gmra.mxu0 %v538
      %v602 = vpop.f32.mrf.mxu0
      %v603 = vadd.f32 0.0, %v602
      %604 = vmatmul.f32.gmra.mxu0 %v541
      %v605 = vpop.f32.mrf.mxu0
      %v606 = vadd.f32 0.0, %v605
      %607 = vmatmul.f32.gmra.mxu0 %v544
      %v608 = vpop.f32.mrf.mxu0
      %v609 = vadd.f32 0.0, %v608
      %610 = vmatmul.f32.gmra.mxu0 %v547
      %v611 = vpop.f32.mrf.mxu0
      %v612 = vadd.f32 0.0, %v611
      %613 = vmatmul.f32.gmra.mxu0 %v550
      %v614 = vpop.f32.mrf.mxu0
      %v615 = vadd.f32 0.0, %v614
      %616 = vmatmul.f32.gmra.mxu0 %v553
      %v617 = vpop.f32.mrf.mxu0
      %v618 = vadd.f32 0.0, %v617
      %619 = vmatmul.f32.gmra.mxu0 %v556
      %v620 = vpop.f32.mrf.mxu0
      %v621 = vadd.f32 0.0, %v620
      %622 = vmatmul.f32.gmra.mxu0 %v559
      %v623 = vpop.f32.mrf.mxu0
      %v624 = vadd.f32 0.0, %v623
      %625 = vmatmul.f32.gmra.mxu0 %v562
      %v626 = vpop.f32.mrf.mxu0
      %v627 = vadd.f32 0.0, %v626
      %628 = vmatmul.f32.gmra.mxu0 %v565
      %v629 = vpop.f32.mrf.mxu0
      %v630 = vadd.f32 0.0, %v629
      %631 = vmatmul.f32.gmra.mxu0 %v568
      %v632 = vpop.f32.mrf.mxu0
      %v633 = vadd.f32 0.0, %v632
      %634 = vmatmul.f32.gmra.mxu0 %v571
      %v635 = vpop.f32.mrf.mxu0
      %v636 = vadd.f32 0.0, %v635
      %637 = vdwg.mxu0
      %v638 = vadd.f32 %v486, %v591
      %v639 = vadd.f32 %v487, %v594
      %v640 = vadd.f32 %v488, %v597
      %v641 = vadd.f32 %v489, %v600
      %v642 = vadd.f32 %v490, %v603
      %v643 = vadd.f32 %v491, %v606
      %v644 = vadd.f32 %v492, %v609
      %v645 = vadd.f32 %v493, %v612
      %v646 = vadd.f32 %v494, %v615
      %v647 = vadd.f32 %v495, %v618
      %v648 = vadd.f32 %v496, %v621
      %v649 = vadd.f32 %v497, %v624
      %v650 = vadd.f32 %v498, %v627
      %v651 = vadd.f32 %v499, %v630
      %v652 = vadd.f32 %v500, %v633
      %v653 = vadd.f32 %v501, %v636
      %s654 = sadd.s32 %s194, 22
      %s655 = scalar_lea.vmem %s183, %s654
      %v656 = vld [vmem:[%s655] sm:$0xff]
      %v657 = vld [vmem:[%s655 + $0x8] sm:$0xff]
      %v658 = vld [vmem:[%s655 + $0x10] sm:$0xff]
      %v659 = vld [vmem:[%s655 + $0x18] sm:$0xff]
      %v660 = vld [vmem:[%s655 + $0x20] sm:$0xff]
      %v661 = vld [vmem:[%s655 + $0x28] sm:$0xff]
      %v662 = vld [vmem:[%s655 + $0x30] sm:$0xff]
      %v663 = vld [vmem:[%s655 + $0x38] sm:$0xff]
      %v664 = vld [vmem:[%s655 + $0x40] sm:$0xff]
      %v665 = vld [vmem:[%s655 + $0x48] sm:$0xff]
      %v666 = vld [vmem:[%s655 + $0x50] sm:$0xff]
      %v667 = vld [vmem:[%s655 + $0x58] sm:$0xff]
      %v668 = vld [vmem:[%s655 + $0x60] sm:$0xff]
      %v669 = vld [vmem:[%s655 + $0x68] sm:$0xff]
      %v670 = vld [vmem:[%s655 + $0x70] sm:$0xff]
      %v671 = vld [vmem:[%s655 + $0x78] sm:$0xff]
      %s672 = scalar_lea.vmem %s1, 96
      %v673 = vld [vmem:[%s672] sm:$0xff]
      %v674 = vld [vmem:[%s672 + $0x8] sm:$0xff]
      %v675 = vld [vmem:[%s672 + $0x10] sm:$0xff]
      %v676 = vld [vmem:[%s672 + $0x18] sm:$0xff]
      %v678 = vsel %vm220, %v656, 0
      %v681 = vsel %vm220, %v657, 0
      %v684 = vsel %vm220, %v658, 0
      %v687 = vsel %vm220, %v659, 0
      %v690 = vsel %vm220, %v660, 0
      %v693 = vsel %vm220, %v661, 0
      %v696 = vsel %vm220, %v662, 0
      %v699 = vsel %vm220, %v663, 0
      %v702 = vsel %vm220, %v664, 0
      %v705 = vsel %vm220, %v665, 0
      %v708 = vsel %vm220, %v666, 0
      %v711 = vsel %vm220, %v667, 0
      %v714 = vsel %vm220, %v668, 0
      %v717 = vsel %vm220, %v669, 0
      %v720 = vsel %vm220, %v670, 0
      %v723 = vsel %vm220, %v671, 0
      %725 = vmatpush.msra.mxu0 0.0
      %726 = vmatpush.msra.mxu0 0.0
      %727 = vmatpush.msra.mxu0 0.0
      %728 = vmatpush.msra.mxu0 0.0
      %729 = vmatpush.msra.mxu0 0.0
      %730 = vmatpush.msra.mxu0 0.0
      %731 = vmatpush.msra.mxu0 0.0
      %732 = vmatpush.msra.mxu0 0.0
      %733 = vmatpush.msra.mxu0 0.0
      %734 = vmatpush.msra.mxu0 0.0
      %735 = vmatpush.msra.mxu0 0.0
      %736 = vmatpush.msra.mxu0 0.0
      %737 = vmatpush.msra.mxu0 %v676
      %738 = vmatpush.msra.mxu0 %v675
      %739 = vmatpush.msra.mxu0 %v674
      %740 = vmatpush.msra.mxu0 %v673
      %741 = vmatmul.f32.gmra.mxu0 %v678
      %v742 = vpop.f32.mrf.mxu0
      %v743 = vadd.f32 0.0, %v742
      %744 = vmatmul.f32.gmra.mxu0 %v681
      %v745 = vpop.f32.mrf.mxu0
      %v746 = vadd.f32 0.0, %v745
      %747 = vmatmul.f32.gmra.mxu0 %v684
      %v748 = vpop.f32.mrf.mxu0
      %v749 = vadd.f32 0.0, %v748
      %750 = vmatmul.f32.gmra.mxu0 %v687
      %v751 = vpop.f32.mrf.mxu0
      %v752 = vadd.f32 0.0, %v751
      %753 = vmatmul.f32.gmra.mxu0 %v690
      %v754 = vpop.f32.mrf.mxu0
      %v755 = vadd.f32 0.0, %v754
      %756 = vmatmul.f32.gmra.mxu0 %v693
      %v757 = vpop.f32.mrf.mxu0
      %v758 = vadd.f32 0.0, %v757
      %759 = vmatmul.f32.gmra.mxu0 %v696
      %v760 = vpop.f32.mrf.mxu0
      %v761 = vadd.f32 0.0, %v760
      %762 = vmatmul.f32.gmra.mxu0 %v699
      %v763 = vpop.f32.mrf.mxu0
      %v764 = vadd.f32 0.0, %v763
      %765 = vmatmul.f32.gmra.mxu0 %v702
      %v766 = vpop.f32.mrf.mxu0
      %v767 = vadd.f32 0.0, %v766
      %768 = vmatmul.f32.gmra.mxu0 %v705
      %v769 = vpop.f32.mrf.mxu0
      %v770 = vadd.f32 0.0, %v769
      %771 = vmatmul.f32.gmra.mxu0 %v708
      %v772 = vpop.f32.mrf.mxu0
      %v773 = vadd.f32 0.0, %v772
      %774 = vmatmul.f32.gmra.mxu0 %v711
      %v775 = vpop.f32.mrf.mxu0
      %v776 = vadd.f32 0.0, %v775
      %777 = vmatmul.f32.gmra.mxu0 %v714
      %v778 = vpop.f32.mrf.mxu0
      %v779 = vadd.f32 0.0, %v778
      %780 = vmatmul.f32.gmra.mxu0 %v717
      %v781 = vpop.f32.mrf.mxu0
      %v782 = vadd.f32 0.0, %v781
      %783 = vmatmul.f32.gmra.mxu0 %v720
      %v784 = vpop.f32.mrf.mxu0
      %v785 = vadd.f32 0.0, %v784
      %786 = vmatmul.f32.gmra.mxu0 %v723
      %v787 = vpop.f32.mrf.mxu0
      %v788 = vadd.f32 0.0, %v787
      %789 = vdwg.mxu0
      %v790 = vadd.f32 %v638, %v743
      %v791 = vadd.f32 %v639, %v746
      %v792 = vadd.f32 %v640, %v749
      %v793 = vadd.f32 %v641, %v752
      %v794 = vadd.f32 %v642, %v755
      %v795 = vadd.f32 %v643, %v758
      %v796 = vadd.f32 %v644, %v761
      %v797 = vadd.f32 %v645, %v764
      %v798 = vadd.f32 %v646, %v767
      %v799 = vadd.f32 %v647, %v770
      %v800 = vadd.f32 %v648, %v773
      %v801 = vadd.f32 %v649, %v776
      %v802 = vadd.f32 %v650, %v779
      %v803 = vadd.f32 %v651, %v782
      %v804 = vadd.f32 %v652, %v785
      %v805 = vadd.f32 %v653, %v788
      %s806 = sadd.s32 %s194, 23
      %s807 = scalar_lea.vmem %s183, %s806
      %v808 = vld [vmem:[%s807] sm:$0xff]
      %v809 = vld [vmem:[%s807 + $0x8] sm:$0xff]
      %v810 = vld [vmem:[%s807 + $0x10] sm:$0xff]
      %v811 = vld [vmem:[%s807 + $0x18] sm:$0xff]
      %v812 = vld [vmem:[%s807 + $0x20] sm:$0xff]
      %v813 = vld [vmem:[%s807 + $0x28] sm:$0xff]
      %v814 = vld [vmem:[%s807 + $0x30] sm:$0xff]
      %v815 = vld [vmem:[%s807 + $0x38] sm:$0xff]
      %v816 = vld [vmem:[%s807 + $0x40] sm:$0xff]
      %v817 = vld [vmem:[%s807 + $0x48] sm:$0xff]
      %v818 = vld [vmem:[%s807 + $0x50] sm:$0xff]
      %v819 = vld [vmem:[%s807 + $0x58] sm:$0xff]
      %v820 = vld [vmem:[%s807 + $0x60] sm:$0xff]
      %v821 = vld [vmem:[%s807 + $0x68] sm:$0xff]
      %v822 = vld [vmem:[%s807 + $0x70] sm:$0xff]
      %v823 = vld [vmem:[%s807 + $0x78] sm:$0xff]
      %s824 = scalar_lea.vmem %s1, 128
      %v825 = vld [vmem:[%s824] sm:$0xff]
      %v826 = vld [vmem:[%s824 + $0x8] sm:$0xff]
      %v827 = vld [vmem:[%s824 + $0x10] sm:$0xff]
      %v828 = vld [vmem:[%s824 + $0x18] sm:$0xff]
      %v830 = vsel %vm220, %v808, 0
      %v833 = vsel %vm220, %v809, 0
      %v836 = vsel %vm220, %v810, 0
      %v839 = vsel %vm220, %v811, 0
      %v842 = vsel %vm220, %v812, 0
      %v845 = vsel %vm220, %v813, 0
      %v848 = vsel %vm220, %v814, 0
      %v851 = vsel %vm220, %v815, 0
      %v854 = vsel %vm220, %v816, 0
      %v857 = vsel %vm220, %v817, 0
      %v860 = vsel %vm220, %v818, 0
      %v863 = vsel %vm220, %v819, 0
      %v866 = vsel %vm220, %v820, 0
      %v869 = vsel %vm220, %v821, 0
      %v872 = vsel %vm220, %v822, 0
      %v875 = vsel %vm220, %v823, 0
      %877 = vmatpush.msra.mxu0 0.0
      %878 = vmatpush.msra.mxu0 0.0
      %879 = vmatpush.msra.mxu0 0.0
      %880 = vmatpush.msra.mxu0 0.0
      %881 = vmatpush.msra.mxu0 0.0
      %882 = vmatpush.msra.mxu0 0.0
      %883 = vmatpush.msra.mxu0 0.0
      %884 = vmatpush.msra.mxu0 0.0
      %885 = vmatpush.msra.mxu0 0.0
      %886 = vmatpush.msra.mxu0 0.0
      %887 = vmatpush.msra.mxu0 0.0
      %888 = vmatpush.msra.mxu0 0.0
      %889 = vmatpush.msra.mxu0 %v828
      %890 = vmatpush.msra.mxu0 %v827
      %891 = vmatpush.msra.mxu0 %v826
      %892 = vmatpush.msra.mxu0 %v825
      %893 = vmatmul.f32.gmra.mxu0 %v830
      %v894 = vpop.f32.mrf.mxu0
      %v895 = vadd.f32 0.0, %v894
      %896 = vmatmul.f32.gmra.mxu0 %v833
      %v897 = vpop.f32.mrf.mxu0
      %v898 = vadd.f32 0.0, %v897
      %899 = vmatmul.f32.gmra.mxu0 %v836
      %v900 = vpop.f32.mrf.mxu0
      %v901 = vadd.f32 0.0, %v900
      %902 = vmatmul.f32.gmra.mxu0 %v839
      %v903 = vpop.f32.mrf.mxu0
      %v904 = vadd.f32 0.0, %v903
      %905 = vmatmul.f32.gmra.mxu0 %v842
      %v906 = vpop.f32.mrf.mxu0
      %v907 = vadd.f32 0.0, %v906
      %908 = vmatmul.f32.gmra.mxu0 %v845
      %v909 = vpop.f32.mrf.mxu0
      %v910 = vadd.f32 0.0, %v909
      %911 = vmatmul.f32.gmra.mxu0 %v848
      %v912 = vpop.f32.mrf.mxu0
      %v913 = vadd.f32 0.0, %v912
      %914 = vmatmul.f32.gmra.mxu0 %v851
      %v915 = vpop.f32.mrf.mxu0
      %v916 = vadd.f32 0.0, %v915
      %917 = vmatmul.f32.gmra.mxu0 %v854
      %v918 = vpop.f32.mrf.mxu0
      %v919 = vadd.f32 0.0, %v918
      %920 = vmatmul.f32.gmra.mxu0 %v857
      %v921 = vpop.f32.mrf.mxu0
      %v922 = vadd.f32 0.0, %v921
      %923 = vmatmul.f32.gmra.mxu0 %v860
      %v924 = vpop.f32.mrf.mxu0
      %v925 = vadd.f32 0.0, %v924
      %926 = vmatmul.f32.gmra.mxu0 %v863
      %v927 = vpop.f32.mrf.mxu0
      %v928 = vadd.f32 0.0, %v927
      %929 = vmatmul.f32.gmra.mxu0 %v866
      %v930 = vpop.f32.mrf.mxu0
      %v931 = vadd.f32 0.0, %v930
      %932 = vmatmul.f32.gmra.mxu0 %v869
      %v933 = vpop.f32.mrf.mxu0
      %v934 = vadd.f32 0.0, %v933
      %935 = vmatmul.f32.gmra.mxu0 %v872
      %v936 = vpop.f32.mrf.mxu0
      %v937 = vadd.f32 0.0, %v936
      %938 = vmatmul.f32.gmra.mxu0 %v875
      %v939 = vpop.f32.mrf.mxu0
      %v940 = vadd.f32 0.0, %v939
      %941 = vdwg.mxu0
      %v942 = vadd.f32 %v790, %v895
      %v943 = vadd.f32 %v791, %v898
      %v944 = vadd.f32 %v792, %v901
      %v945 = vadd.f32 %v793, %v904
      %v946 = vadd.f32 %v794, %v907
      %v947 = vadd.f32 %v795, %v910
      %v948 = vadd.f32 %v796, %v913
      %v949 = vadd.f32 %v797, %v916
      %v950 = vadd.f32 %v798, %v919
      %v951 = vadd.f32 %v799, %v922
      %v952 = vadd.f32 %v800, %v925
      %v953 = vadd.f32 %v801, %v928
      %v954 = vadd.f32 %v802, %v931
      %v955 = vadd.f32 %v803, %v934
      %v956 = vadd.f32 %v804, %v937
      %v957 = vadd.f32 %v805, %v940
      %s958 = sadd.s32 %s194, 24
      %s959 = scalar_lea.vmem %s183, %s958
      %v960 = vld [vmem:[%s959] sm:$0xff]
      %v961 = vld [vmem:[%s959 + $0x8] sm:$0xff]
      %v962 = vld [vmem:[%s959 + $0x10] sm:$0xff]
      %v963 = vld [vmem:[%s959 + $0x18] sm:$0xff]
      %v964 = vld [vmem:[%s959 + $0x20] sm:$0xff]
      %v965 = vld [vmem:[%s959 + $0x28] sm:$0xff]
      %v966 = vld [vmem:[%s959 + $0x30] sm:$0xff]
      %v967 = vld [vmem:[%s959 + $0x38] sm:$0xff]
      %v968 = vld [vmem:[%s959 + $0x40] sm:$0xff]
      %v969 = vld [vmem:[%s959 + $0x48] sm:$0xff]
      %v970 = vld [vmem:[%s959 + $0x50] sm:$0xff]
      %v971 = vld [vmem:[%s959 + $0x58] sm:$0xff]
      %v972 = vld [vmem:[%s959 + $0x60] sm:$0xff]
      %v973 = vld [vmem:[%s959 + $0x68] sm:$0xff]
      %v974 = vld [vmem:[%s959 + $0x70] sm:$0xff]
      %v975 = vld [vmem:[%s959 + $0x78] sm:$0xff]
      %s976 = scalar_lea.vmem %s1, 160
      %v977 = vld [vmem:[%s976] sm:$0xff]
      %v978 = vld [vmem:[%s976 + $0x8] sm:$0xff]
      %v979 = vld [vmem:[%s976 + $0x10] sm:$0xff]
      %v980 = vld [vmem:[%s976 + $0x18] sm:$0xff]
      %v982 = vsel %vm220, %v960, 0
      %v985 = vsel %vm220, %v961, 0
      %v988 = vsel %vm220, %v962, 0
      %v991 = vsel %vm220, %v963, 0
      %v994 = vsel %vm220, %v964, 0
      %v997 = vsel %vm220, %v965, 0
      %v1000 = vsel %vm220, %v966, 0
      %v1003 = vsel %vm220, %v967, 0
      %v1006 = vsel %vm220, %v968, 0
      %v1009 = vsel %vm220, %v969, 0
      %v1012 = vsel %vm220, %v970, 0
      %v1015 = vsel %vm220, %v971, 0
      %v1018 = vsel %vm220, %v972, 0
      %v1021 = vsel %vm220, %v973, 0
      %v1024 = vsel %vm220, %v974, 0
      %v1027 = vsel %vm220, %v975, 0
      %1029 = vmatpush.msra.mxu0 0.0
      %1030 = vmatpush.msra.mxu0 0.0
      %1031 = vmatpush.msra.mxu0 0.0
      %1032 = vmatpush.msra.mxu0 0.0
      %1033 = vmatpush.msra.mxu0 0.0
      %1034 = vmatpush.msra.mxu0 0.0
      %1035 = vmatpush.msra.mxu0 0.0
      %1036 = vmatpush.msra.mxu0 0.0
      %1037 = vmatpush.msra.mxu0 0.0
      %1038 = vmatpush.msra.mxu0 0.0
      %1039 = vmatpush.msra.mxu0 0.0
      %1040 = vmatpush.msra.mxu0 0.0
      %1041 = vmatpush.msra.mxu0 %v980
      %1042 = vmatpush.msra.mxu0 %v979
      %1043 = vmatpush.msra.mxu0 %v978
      %1044 = vmatpush.msra.mxu0 %v977
      %1045 = vmatmul.f32.gmra.mxu0 %v982
      %v1046 = vpop.f32.mrf.mxu0
      %v1047 = vadd.f32 0.0, %v1046
      %1048 = vmatmul.f32.gmra.mxu0 %v985
      %v1049 = vpop.f32.mrf.mxu0
      %v1050 = vadd.f32 0.0, %v1049
      %1051 = vmatmul.f32.gmra.mxu0 %v988
      %v1052 = vpop.f32.mrf.mxu0
      %v1053 = vadd.f32 0.0, %v1052
      %1054 = vmatmul.f32.gmra.mxu0 %v991
      %v1055 = vpop.f32.mrf.mxu0
      %v1056 = vadd.f32 0.0, %v1055
      %1057 = vmatmul.f32.gmra.mxu0 %v994
      %v1058 = vpop.f32.mrf.mxu0
      %v1059 = vadd.f32 0.0, %v1058
      %1060 = vmatmul.f32.gmra.mxu0 %v997
      %v1061 = vpop.f32.mrf.mxu0
      %v1062 = vadd.f32 0.0, %v1061
      %1063 = vmatmul.f32.gmra.mxu0 %v1000
      %v1064 = vpop.f32.mrf.mxu0
      %v1065 = vadd.f32 0.0, %v1064
      %1066 = vmatmul.f32.gmra.mxu0 %v1003
      %v1067 = vpop.f32.mrf.mxu0
      %v1068 = vadd.f32 0.0, %v1067
      %1069 = vmatmul.f32.gmra.mxu0 %v1006
      %v1070 = vpop.f32.mrf.mxu0
      %v1071 = vadd.f32 0.0, %v1070
      %1072 = vmatmul.f32.gmra.mxu0 %v1009
      %v1073 = vpop.f32.mrf.mxu0
      %v1074 = vadd.f32 0.0, %v1073
      %1075 = vmatmul.f32.gmra.mxu0 %v1012
      %v1076 = vpop.f32.mrf.mxu0
      %v1077 = vadd.f32 0.0, %v1076
      %1078 = vmatmul.f32.gmra.mxu0 %v1015
      %v1079 = vpop.f32.mrf.mxu0
      %v1080 = vadd.f32 0.0, %v1079
      %1081 = vmatmul.f32.gmra.mxu0 %v1018
      %v1082 = vpop.f32.mrf.mxu0
      %v1083 = vadd.f32 0.0, %v1082
      %1084 = vmatmul.f32.gmra.mxu0 %v1021
      %v1085 = vpop.f32.mrf.mxu0
      %v1086 = vadd.f32 0.0, %v1085
      %1087 = vmatmul.f32.gmra.mxu0 %v1024
      %v1088 = vpop.f32.mrf.mxu0
      %v1089 = vadd.f32 0.0, %v1088
      %1090 = vmatmul.f32.gmra.mxu0 %v1027
      %v1091 = vpop.f32.mrf.mxu0
      %v1092 = vadd.f32 0.0, %v1091
      %1093 = vdwg.mxu0
      %v1094 = vadd.f32 %v942, %v1047
      %v1095 = vadd.f32 %v943, %v1050
      %v1096 = vadd.f32 %v944, %v1053
      %v1097 = vadd.f32 %v945, %v1056
      %v1098 = vadd.f32 %v946, %v1059
      %v1099 = vadd.f32 %v947, %v1062
      %v1100 = vadd.f32 %v948, %v1065
      %v1101 = vadd.f32 %v949, %v1068
      %v1102 = vadd.f32 %v950, %v1071
      %v1103 = vadd.f32 %v951, %v1074
      %v1104 = vadd.f32 %v952, %v1077
      %v1105 = vadd.f32 %v953, %v1080
      %v1106 = vadd.f32 %v954, %v1083
      %v1107 = vadd.f32 %v955, %v1086
      %v1108 = vadd.f32 %v956, %v1089
      %v1109 = vadd.f32 %v957, %v1092
      %s1110 = sadd.s32 %s194, 44
      %s1111 = scalar_lea.vmem %s183, %s1110
      %v1112 = vld [vmem:[%s1111] sm:$0xff]
      %v1113 = vld [vmem:[%s1111 + $0x8] sm:$0xff]
      %v1114 = vld [vmem:[%s1111 + $0x10] sm:$0xff]
      %v1115 = vld [vmem:[%s1111 + $0x18] sm:$0xff]
      %v1116 = vld [vmem:[%s1111 + $0x20] sm:$0xff]
      %v1117 = vld [vmem:[%s1111 + $0x28] sm:$0xff]
      %v1118 = vld [vmem:[%s1111 + $0x30] sm:$0xff]
      %v1119 = vld [vmem:[%s1111 + $0x38] sm:$0xff]
      %v1120 = vld [vmem:[%s1111 + $0x40] sm:$0xff]
      %v1121 = vld [vmem:[%s1111 + $0x48] sm:$0xff]
      %v1122 = vld [vmem:[%s1111 + $0x50] sm:$0xff]
      %v1123 = vld [vmem:[%s1111 + $0x58] sm:$0xff]
      %v1124 = vld [vmem:[%s1111 + $0x60] sm:$0xff]
      %v1125 = vld [vmem:[%s1111 + $0x68] sm:$0xff]
      %v1126 = vld [vmem:[%s1111 + $0x70] sm:$0xff]
      %v1127 = vld [vmem:[%s1111 + $0x78] sm:$0xff]
      %s1128 = scalar_lea.vmem %s1, 192
      %v1129 = vld [vmem:[%s1128] sm:$0xff]
      %v1130 = vld [vmem:[%s1128 + $0x8] sm:$0xff]
      %v1131 = vld [vmem:[%s1128 + $0x10] sm:$0xff]
      %v1132 = vld [vmem:[%s1128 + $0x18] sm:$0xff]
      %v1134 = vsel %vm220, %v1112, 0
      %v1137 = vsel %vm220, %v1113, 0
      %v1140 = vsel %vm220, %v1114, 0
      %v1143 = vsel %vm220, %v1115, 0
      %v1146 = vsel %vm220, %v1116, 0
      %v1149 = vsel %vm220, %v1117, 0
      %v1152 = vsel %vm220, %v1118, 0
      %v1155 = vsel %vm220, %v1119, 0
      %v1158 = vsel %vm220, %v1120, 0
      %v1161 = vsel %vm220, %v1121, 0
      %v1164 = vsel %vm220, %v1122, 0
      %v1167 = vsel %vm220, %v1123, 0
      %v1170 = vsel %vm220, %v1124, 0
      %v1173 = vsel %vm220, %v1125, 0
      %v1176 = vsel %vm220, %v1126, 0
      %v1179 = vsel %vm220, %v1127, 0
      %1181 = vmatpush.msra.mxu0 0.0
      %1182 = vmatpush.msra.mxu0 0.0
      %1183 = vmatpush.msra.mxu0 0.0
      %1184 = vmatpush.msra.mxu0 0.0
      %1185 = vmatpush.msra.mxu0 0.0
      %1186 = vmatpush.msra.mxu0 0.0
      %1187 = vmatpush.msra.mxu0 0.0
      %1188 = vmatpush.msra.mxu0 0.0
      %1189 = vmatpush.msra.mxu0 0.0
      %1190 = vmatpush.msra.mxu0 0.0
      %1191 = vmatpush.msra.mxu0 0.0
      %1192 = vmatpush.msra.mxu0 0.0
      %1193 = vmatpush.msra.mxu0 %v1132
      %1194 = vmatpush.msra.mxu0 %v1131
      %1195 = vmatpush.msra.mxu0 %v1130
      %1196 = vmatpush.msra.mxu0 %v1129
      %1197 = vmatmul.f32.gmra.mxu0 %v1134
      %v1198 = vpop.f32.mrf.mxu0
      %v1199 = vadd.f32 0.0, %v1198
      %1200 = vmatmul.f32.gmra.mxu0 %v1137
      %v1201 = vpop.f32.mrf.mxu0
      %v1202 = vadd.f32 0.0, %v1201
      %1203 = vmatmul.f32.gmra.mxu0 %v1140
      %v1204 = vpop.f32.mrf.mxu0
      %v1205 = vadd.f32 0.0, %v1204
      %1206 = vmatmul.f32.gmra.mxu0 %v1143
      %v1207 = vpop.f32.mrf.mxu0
      %v1208 = vadd.f32 0.0, %v1207
      %1209 = vmatmul.f32.gmra.mxu0 %v1146
      %v1210 = vpop.f32.mrf.mxu0
      %v1211 = vadd.f32 0.0, %v1210
      %1212 = vmatmul.f32.gmra.mxu0 %v1149
      %v1213 = vpop.f32.mrf.mxu0
      %v1214 = vadd.f32 0.0, %v1213
      %1215 = vmatmul.f32.gmra.mxu0 %v1152
      %v1216 = vpop.f32.mrf.mxu0
      %v1217 = vadd.f32 0.0, %v1216
      %1218 = vmatmul.f32.gmra.mxu0 %v1155
      %v1219 = vpop.f32.mrf.mxu0
      %v1220 = vadd.f32 0.0, %v1219
      %1221 = vmatmul.f32.gmra.mxu0 %v1158
      %v1222 = vpop.f32.mrf.mxu0
      %v1223 = vadd.f32 0.0, %v1222
      %1224 = vmatmul.f32.gmra.mxu0 %v1161
      %v1225 = vpop.f32.mrf.mxu0
      %v1226 = vadd.f32 0.0, %v1225
      %1227 = vmatmul.f32.gmra.mxu0 %v1164
      %v1228 = vpop.f32.mrf.mxu0
      %v1229 = vadd.f32 0.0, %v1228
      %1230 = vmatmul.f32.gmra.mxu0 %v1167
      %v1231 = vpop.f32.mrf.mxu0
      %v1232 = vadd.f32 0.0, %v1231
      %1233 = vmatmul.f32.gmra.mxu0 %v1170
      %v1234 = vpop.f32.mrf.mxu0
      %v1235 = vadd.f32 0.0, %v1234
      %1236 = vmatmul.f32.gmra.mxu0 %v1173
      %v1237 = vpop.f32.mrf.mxu0
      %v1238 = vadd.f32 0.0, %v1237
      %1239 = vmatmul.f32.gmra.mxu0 %v1176
      %v1240 = vpop.f32.mrf.mxu0
      %v1241 = vadd.f32 0.0, %v1240
      %1242 = vmatmul.f32.gmra.mxu0 %v1179
      %v1243 = vpop.f32.mrf.mxu0
      %v1244 = vadd.f32 0.0, %v1243
      %1245 = vdwg.mxu0
      %v1246 = vadd.f32 %v1094, %v1199
      %v1247 = vadd.f32 %v1095, %v1202
      %v1248 = vadd.f32 %v1096, %v1205
      %v1249 = vadd.f32 %v1097, %v1208
      %v1250 = vadd.f32 %v1098, %v1211
      %v1251 = vadd.f32 %v1099, %v1214
      %v1252 = vadd.f32 %v1100, %v1217
      %v1253 = vadd.f32 %v1101, %v1220
      %v1254 = vadd.f32 %v1102, %v1223
      %v1255 = vadd.f32 %v1103, %v1226
      %v1256 = vadd.f32 %v1104, %v1229
      %v1257 = vadd.f32 %v1105, %v1232
      %v1258 = vadd.f32 %v1106, %v1235
      %v1259 = vadd.f32 %v1107, %v1238
      %v1260 = vadd.f32 %v1108, %v1241
      %v1261 = vadd.f32 %v1109, %v1244
      %s1262 = sadd.s32 %s194, 45
      %s1263 = scalar_lea.vmem %s183, %s1262
      %v1264 = vld [vmem:[%s1263] sm:$0xff]
      %v1265 = vld [vmem:[%s1263 + $0x8] sm:$0xff]
      %v1266 = vld [vmem:[%s1263 + $0x10] sm:$0xff]
      %v1267 = vld [vmem:[%s1263 + $0x18] sm:$0xff]
      %v1268 = vld [vmem:[%s1263 + $0x20] sm:$0xff]
      %v1269 = vld [vmem:[%s1263 + $0x28] sm:$0xff]
      %v1270 = vld [vmem:[%s1263 + $0x30] sm:$0xff]
      %v1271 = vld [vmem:[%s1263 + $0x38] sm:$0xff]
      %v1272 = vld [vmem:[%s1263 + $0x40] sm:$0xff]
      %v1273 = vld [vmem:[%s1263 + $0x48] sm:$0xff]
      %v1274 = vld [vmem:[%s1263 + $0x50] sm:$0xff]
      %v1275 = vld [vmem:[%s1263 + $0x58] sm:$0xff]
      %v1276 = vld [vmem:[%s1263 + $0x60] sm:$0xff]
      %v1277 = vld [vmem:[%s1263 + $0x68] sm:$0xff]
      %v1278 = vld [vmem:[%s1263 + $0x70] sm:$0xff]
      %v1279 = vld [vmem:[%s1263 + $0x78] sm:$0xff]
      %s1280 = scalar_lea.vmem %s1, 224
      %v1281 = vld [vmem:[%s1280] sm:$0xff]
      %v1282 = vld [vmem:[%s1280 + $0x8] sm:$0xff]
      %v1283 = vld [vmem:[%s1280 + $0x10] sm:$0xff]
      %v1284 = vld [vmem:[%s1280 + $0x18] sm:$0xff]
      %v1286 = vsel %vm220, %v1264, 0
      %v1289 = vsel %vm220, %v1265, 0
      %v1292 = vsel %vm220, %v1266, 0
      %v1295 = vsel %vm220, %v1267, 0
      %v1298 = vsel %vm220, %v1268, 0
      %v1301 = vsel %vm220, %v1269, 0
      %v1304 = vsel %vm220, %v1270, 0
      %v1307 = vsel %vm220, %v1271, 0
      %v1310 = vsel %vm220, %v1272, 0
      %v1313 = vsel %vm220, %v1273, 0
      %v1316 = vsel %vm220, %v1274, 0
      %v1319 = vsel %vm220, %v1275, 0
      %v1322 = vsel %vm220, %v1276, 0
      %v1325 = vsel %vm220, %v1277, 0
      %v1328 = vsel %vm220, %v1278, 0
      %v1331 = vsel %vm220, %v1279, 0
      %1333 = vmatpush.msra.mxu0 0.0
      %1334 = vmatpush.msra.mxu0 0.0
      %1335 = vmatpush.msra.mxu0 0.0
      %1336 = vmatpush.msra.mxu0 0.0
      %1337 = vmatpush.msra.mxu0 0.0
      %1338 = vmatpush.msra.mxu0 0.0
      %1339 = vmatpush.msra.mxu0 0.0
      %1340 = vmatpush.msra.mxu0 0.0
      %1341 = vmatpush.msra.mxu0 0.0
      %1342 = vmatpush.msra.mxu0 0.0
      %1343 = vmatpush.msra.mxu0 0.0
      %1344 = vmatpush.msra.mxu0 0.0
      %1345 = vmatpush.msra.mxu0 %v1284
      %1346 = vmatpush.msra.mxu0 %v1283
      %1347 = vmatpush.msra.mxu0 %v1282
      %1348 = vmatpush.msra.mxu0 %v1281
      %1349 = vmatmul.f32.gmra.mxu0 %v1286
      %v1350 = vpop.f32.mrf.mxu0
      %v1351 = vadd.f32 0.0, %v1350
      %1352 = vmatmul.f32.gmra.mxu0 %v1289
      %v1353 = vpop.f32.mrf.mxu0
      %v1354 = vadd.f32 0.0, %v1353
      %1355 = vmatmul.f32.gmra.mxu0 %v1292
      %v1356 = vpop.f32.mrf.mxu0
      %v1357 = vadd.f32 0.0, %v1356
      %1358 = vmatmul.f32.gmra.mxu0 %v1295
      %v1359 = vpop.f32.mrf.mxu0
      %v1360 = vadd.f32 0.0, %v1359
      %1361 = vmatmul.f32.gmra.mxu0 %v1298
      %v1362 = vpop.f32.mrf.mxu0
      %v1363 = vadd.f32 0.0, %v1362
      %1364 = vmatmul.f32.gmra.mxu0 %v1301
      %v1365 = vpop.f32.mrf.mxu0
      %v1366 = vadd.f32 0.0, %v1365
      %1367 = vmatmul.f32.gmra.mxu0 %v1304
      %v1368 = vpop.f32.mrf.mxu0
      %v1369 = vadd.f32 0.0, %v1368
      %1370 = vmatmul.f32.gmra.mxu0 %v1307
      %v1371 = vpop.f32.mrf.mxu0
      %v1372 = vadd.f32 0.0, %v1371
      %1373 = vmatmul.f32.gmra.mxu0 %v1310
      %v1374 = vpop.f32.mrf.mxu0
      %v1375 = vadd.f32 0.0, %v1374
      %1376 = vmatmul.f32.gmra.mxu0 %v1313
      %v1377 = vpop.f32.mrf.mxu0
      %v1378 = vadd.f32 0.0, %v1377
      %1379 = vmatmul.f32.gmra.mxu0 %v1316
      %v1380 = vpop.f32.mrf.mxu0
      %v1381 = vadd.f32 0.0, %v1380
      %1382 = vmatmul.f32.gmra.mxu0 %v1319
      %v1383 = vpop.f32.mrf.mxu0
      %v1384 = vadd.f32 0.0, %v1383
      %1385 = vmatmul.f32.gmra.mxu0 %v1322
      %v1386 = vpop.f32.mrf.mxu0
      %v1387 = vadd.f32 0.0, %v1386
      %1388 = vmatmul.f32.gmra.mxu0 %v1325
      %v1389 = vpop.f32.mrf.mxu0
      %v1390 = vadd.f32 0.0, %v1389
      %1391 = vmatmul.f32.gmra.mxu0 %v1328
      %v1392 = vpop.f32.mrf.mxu0
      %v1393 = vadd.f32 0.0, %v1392
      %1394 = vmatmul.f32.gmra.mxu0 %v1331
      %v1395 = vpop.f32.mrf.mxu0
      %v1396 = vadd.f32 0.0, %v1395
      %1397 = vdwg.mxu0
      %v1398 = vadd.f32 %v1246, %v1351
      %v1399 = vadd.f32 %v1247, %v1354
      %v1400 = vadd.f32 %v1248, %v1357
      %v1401 = vadd.f32 %v1249, %v1360
      %v1402 = vadd.f32 %v1250, %v1363
      %v1403 = vadd.f32 %v1251, %v1366
      %v1404 = vadd.f32 %v1252, %v1369
      %v1405 = vadd.f32 %v1253, %v1372
      %v1406 = vadd.f32 %v1254, %v1375
      %v1407 = vadd.f32 %v1255, %v1378
      %v1408 = vadd.f32 %v1256, %v1381
      %v1409 = vadd.f32 %v1257, %v1384
      %v1410 = vadd.f32 %v1258, %v1387
      %v1411 = vadd.f32 %v1259, %v1390
      %v1412 = vadd.f32 %v1260, %v1393
      %v1413 = vadd.f32 %v1261, %v1396
      %s1414 = sadd.s32 %s194, 46
      %s1415 = scalar_lea.vmem %s183, %s1414
      %v1416 = vld [vmem:[%s1415] sm:$0xff]
      %v1417 = vld [vmem:[%s1415 + $0x8] sm:$0xff]
      %v1418 = vld [vmem:[%s1415 + $0x10] sm:$0xff]
      %v1419 = vld [vmem:[%s1415 + $0x18] sm:$0xff]
      %v1420 = vld [vmem:[%s1415 + $0x20] sm:$0xff]
      %v1421 = vld [vmem:[%s1415 + $0x28] sm:$0xff]
      %v1422 = vld [vmem:[%s1415 + $0x30] sm:$0xff]
      %v1423 = vld [vmem:[%s1415 + $0x38] sm:$0xff]
      %v1424 = vld [vmem:[%s1415 + $0x40] sm:$0xff]
      %v1425 = vld [vmem:[%s1415 + $0x48] sm:$0xff]
      %v1426 = vld [vmem:[%s1415 + $0x50] sm:$0xff]
      %v1427 = vld [vmem:[%s1415 + $0x58] sm:$0xff]
      %v1428 = vld [vmem:[%s1415 + $0x60] sm:$0xff]
      %v1429 = vld [vmem:[%s1415 + $0x68] sm:$0xff]
      %v1430 = vld [vmem:[%s1415 + $0x70] sm:$0xff]
      %v1431 = vld [vmem:[%s1415 + $0x78] sm:$0xff]
      %s1432 = scalar_lea.vmem %s1, 256
      %v1433 = vld [vmem:[%s1432] sm:$0xff]
      %v1434 = vld [vmem:[%s1432 + $0x8] sm:$0xff]
      %v1435 = vld [vmem:[%s1432 + $0x10] sm:$0xff]
      %v1436 = vld [vmem:[%s1432 + $0x18] sm:$0xff]
      %v1438 = vsel %vm220, %v1416, 0
      %v1441 = vsel %vm220, %v1417, 0
      %v1444 = vsel %vm220, %v1418, 0
      %v1447 = vsel %vm220, %v1419, 0
      %v1450 = vsel %vm220, %v1420, 0
      %v1453 = vsel %vm220, %v1421, 0
      %v1456 = vsel %vm220, %v1422, 0
      %v1459 = vsel %vm220, %v1423, 0
      %v1462 = vsel %vm220, %v1424, 0
      %v1465 = vsel %vm220, %v1425, 0
      %v1468 = vsel %vm220, %v1426, 0
      %v1471 = vsel %vm220, %v1427, 0
      %v1474 = vsel %vm220, %v1428, 0
      %v1477 = vsel %vm220, %v1429, 0
      %v1480 = vsel %vm220, %v1430, 0
      %v1483 = vsel %vm220, %v1431, 0
      %1485 = vmatpush.msra.mxu0 0.0
      %1486 = vmatpush.msra.mxu0 0.0
      %1487 = vmatpush.msra.mxu0 0.0
      %1488 = vmatpush.msra.mxu0 0.0
      %1489 = vmatpush.msra.mxu0 0.0
      %1490 = vmatpush.msra.mxu0 0.0
      %1491 = vmatpush.msra.mxu0 0.0
      %1492 = vmatpush.msra.mxu0 0.0
      %1493 = vmatpush.msra.mxu0 0.0
      %1494 = vmatpush.msra.mxu0 0.0
      %1495 = vmatpush.msra.mxu0 0.0
      %1496 = vmatpush.msra.mxu0 0.0
      %1497 = vmatpush.msra.mxu0 %v1436
      %1498 = vmatpush.msra.mxu0 %v1435
      %1499 = vmatpush.msra.mxu0 %v1434
      %1500 = vmatpush.msra.mxu0 %v1433
      %1501 = vmatmul.f32.gmra.mxu0 %v1438
      %v1502 = vpop.f32.mrf.mxu0
      %v1503 = vadd.f32 0.0, %v1502
      %1504 = vmatmul.f32.gmra.mxu0 %v1441
      %v1505 = vpop.f32.mrf.mxu0
      %v1506 = vadd.f32 0.0, %v1505
      %1507 = vmatmul.f32.gmra.mxu0 %v1444
      %v1508 = vpop.f32.mrf.mxu0
      %v1509 = vadd.f32 0.0, %v1508
      %1510 = vmatmul.f32.gmra.mxu0 %v1447
      %v1511 = vpop.f32.mrf.mxu0
      %v1512 = vadd.f32 0.0, %v1511
      %1513 = vmatmul.f32.gmra.mxu0 %v1450
      %v1514 = vpop.f32.mrf.mxu0
      %v1515 = vadd.f32 0.0, %v1514
      %1516 = vmatmul.f32.gmra.mxu0 %v1453
      %v1517 = vpop.f32.mrf.mxu0
      %v1518 = vadd.f32 0.0, %v1517
      %1519 = vmatmul.f32.gmra.mxu0 %v1456
      %v1520 = vpop.f32.mrf.mxu0
      %v1521 = vadd.f32 0.0, %v1520
      %1522 = vmatmul.f32.gmra.mxu0 %v1459
      %v1523 = vpop.f32.mrf.mxu0
      %v1524 = vadd.f32 0.0, %v1523
      %1525 = vmatmul.f32.gmra.mxu0 %v1462
      %v1526 = vpop.f32.mrf.mxu0
      %v1527 = vadd.f32 0.0, %v1526
      %1528 = vmatmul.f32.gmra.mxu0 %v1465
      %v1529 = vpop.f32.mrf.mxu0
      %v1530 = vadd.f32 0.0, %v1529
      %1531 = vmatmul.f32.gmra.mxu0 %v1468
      %v1532 = vpop.f32.mrf.mxu0
      %v1533 = vadd.f32 0.0, %v1532
      %1534 = vmatmul.f32.gmra.mxu0 %v1471
      %v1535 = vpop.f32.mrf.mxu0
      %v1536 = vadd.f32 0.0, %v1535
      %1537 = vmatmul.f32.gmra.mxu0 %v1474
      %v1538 = vpop.f32.mrf.mxu0
      %v1539 = vadd.f32 0.0, %v1538
      %1540 = vmatmul.f32.gmra.mxu0 %v1477
      %v1541 = vpop.f32.mrf.mxu0
      %v1542 = vadd.f32 0.0, %v1541
      %1543 = vmatmul.f32.gmra.mxu0 %v1480
      %v1544 = vpop.f32.mrf.mxu0
      %v1545 = vadd.f32 0.0, %v1544
      %1546 = vmatmul.f32.gmra.mxu0 %v1483
      %v1547 = vpop.f32.mrf.mxu0
      %v1548 = vadd.f32 0.0, %v1547
      %1549 = vdwg.mxu0
      %v1550 = vadd.f32 %v1398, %v1503
      %v1551 = vadd.f32 %v1399, %v1506
      %v1552 = vadd.f32 %v1400, %v1509
      %v1553 = vadd.f32 %v1401, %v1512
      %v1554 = vadd.f32 %v1402, %v1515
      %v1555 = vadd.f32 %v1403, %v1518
      %v1556 = vadd.f32 %v1404, %v1521
      %v1557 = vadd.f32 %v1405, %v1524
      %v1558 = vadd.f32 %v1406, %v1527
      %v1559 = vadd.f32 %v1407, %v1530
      %v1560 = vadd.f32 %v1408, %v1533
      %v1561 = vadd.f32 %v1409, %v1536
      %v1562 = vadd.f32 %v1410, %v1539
      %v1563 = vadd.f32 %v1411, %v1542
      %v1564 = vadd.f32 %v1412, %v1545
      %v1565 = vadd.f32 %v1413, %v1548
      %v1566 = vmax.f32 %v1550, 0.0
      %v1567 = vmax.f32 %v1551, 0.0
      %v1568 = vmax.f32 %v1552, 0.0
      %v1569 = vmax.f32 %v1553, 0.0
      %v1570 = vmax.f32 %v1554, 0.0
      %v1571 = vmax.f32 %v1555, 0.0
      %v1572 = vmax.f32 %v1556, 0.0
      %v1573 = vmax.f32 %v1557, 0.0
      %v1574 = vmax.f32 %v1558, 0.0
      %v1575 = vmax.f32 %v1559, 0.0
      %v1576 = vmax.f32 %v1560, 0.0
      %v1577 = vmax.f32 %v1561, 0.0
      %v1578 = vmax.f32 %v1562, 0.0
      %v1579 = vmax.f32 %v1563, 0.0
      %v1580 = vmax.f32 %v1564, 0.0
      %v1581 = vmax.f32 %v1565, 0.0
      %vm1582 = vcmask 392192
      %1583 = vst.msk [vmem:[%s192] sm:$0xff] %vm1582, %v1566
      %1584 = vst.msk [vmem:[%s192 + $0x8] sm:$0xff] %vm1582, %v1567
      %1585 = vst.msk [vmem:[%s192 + $0x10] sm:$0xff] %vm1582, %v1568
      %1586 = vst.msk [vmem:[%s192 + $0x18] sm:$0xff] %vm1582, %v1569
      %1587 = vst.msk [vmem:[%s192 + $0x20] sm:$0xff] %vm1582, %v1570
      %1588 = vst.msk [vmem:[%s192 + $0x28] sm:$0xff] %vm1582, %v1571
      %1589 = vst.msk [vmem:[%s192 + $0x30] sm:$0xff] %vm1582, %v1572
      %1590 = vst.msk [vmem:[%s192 + $0x38] sm:$0xff] %vm1582, %v1573
      %1591 = vst.msk [vmem:[%s192 + $0x40] sm:$0xff] %vm1582, %v1574
      %1592 = vst.msk [vmem:[%s192 + $0x48] sm:$0xff] %vm1582, %v1575
      %1593 = vst.msk [vmem:[%s192 + $0x50] sm:$0xff] %vm1582, %v1576
      %1594 = vst.msk [vmem:[%s192 + $0x58] sm:$0xff] %vm1582, %v1577
      %1595 = vst.msk [vmem:[%s192 + $0x60] sm:$0xff] %vm1582, %v1578
      %1596 = vst.msk [vmem:[%s192 + $0x68] sm:$0xff] %vm1582, %v1579
      %1597 = vst.msk [vmem:[%s192 + $0x70] sm:$0xff] %vm1582, %v1580
      %1598 = vst.msk [vmem:[%s192 + $0x78] sm:$0xff] %vm1582, %v1581
      %s1599 = smul.u32 16, %s19
      %p1600 = scmp.lt.s32.totalorder %s18, 1
      %s1601 = scalar_select %p1600, %s18, 1
      %p1602 = scmp.lt.s32.totalorder %s1599, 47
      %s1603 = scalar_select %p1602, %s1599, 47
      %s1604 = smul.addr %s1601, 48
      %s1605 = sadd.s32 %s1603, %s1604
      %s1606 = smul.addr %s1605, 8
      %s1607 = scalar_lea.vmem %s3, %s1606
      // Predicated region
      $region33: #{tpu_custom_call.1} parent=31 // pred_check
        %p1608 = pneg %p114
      $region34: #{tpu_custom_call.1} parent=31 // pred_check_branch
        %1610 = sbr.rel (%p1608) target = $region36
      $region35: #{tpu_custom_call.1} parent=31 // pred_region
        %s1611 = smul.u32 16, %s19
      $region36: #{tpu_custom_call.1} parent=31 // pred_fallthru
        _
    $region32: #{tpu_custom_call.1} parent=5 // pred_fallthru
      _
    %p1612 = scmp.le.s32.totalorder 2, %s9
    // Predicated region
    $region37: #{tpu_custom_call.1} parent=5 // pred_check
      %p1613 = pneg %p1612
    $region38: #{tpu_custom_call.1} parent=5 // pred_check_branch
      %1615 = sbr.rel (%p1613) target = $region40
    $region39: #{tpu_custom_call.1} parent=5 // pred_region
      %s1616 = ssub.s32 %s9, 2
      // Predicated region
      $region41: #{tpu_custom_call.1} parent=39 // pred_check
        %p1617 = pneg %p120
      $region42: #{tpu_custom_call.1} parent=39 // pred_check_branch
        %1619 = sbr.rel (%p1617) target = $region44
      $region43: #{tpu_custom_call.1} parent=39 // pred_region
        %s1620 = smul.u32 16, %s21
        %p1621 = scmp.lt.s32.totalorder %s20, 1
        %s1622 = scalar_select %p1621, %s20, 1
        %p1623 = scmp.lt.s32.totalorder %s1620, 47
        %s1624 = scalar_select %p1623, %s1620, 47
        %s1625 = smul.addr %s1622, 48
        %s1626 = sadd.s32 %s1624, %s1625
        %s1627 = smul.addr %s1626, 8
        %s1628 = scalar_lea.vmem %s3, %s1627
      $region44: #{tpu_custom_call.1} parent=39 // pred_fallthru
        _
    $region40: #{tpu_custom_call.1} parent=5 // pred_fallthru
      _
  $region6: #{tpu_custom_call.1} parent=0 // loop_footer
    %s13 = sadd.s32 1, %s9
  $region7: #{tpu_custom_call.1} parent=0 // loop_footer_branch
    %8 = sbr.rel target = $region3
  $region8: #{tpu_custom_call.1} parent=0 // loop_exit
    _

</llo_original>
